<compile_context>
chip_gen: v6e
topology: v6e:2x2x1
jax: 0.10.0
libtpu: 0.0.40
codegen_flags: <defaults>
</compile_context>

<pallas_src>
import numpy as np
import jax
import jax.numpy as jnp
from jax.experimental import pallas as pl
from jax.experimental.pallas import tpu as pltpu


def _gelu_tanh(x):
    # tanh-based GELU: the transcendental runs on the otherwise-idle EUP slot.
    c = 0.7978845608028654  # sqrt(2/pi)
    return 0.5 * x * (1.0 + jnp.tanh(c * (x + 0.044715 * (x * x * x))))


def _make_kernel(H, W, Ch, NB):
    Wp = W + 2
    Lpad = (H + 2) * Wp          # zero-padded, flattened spatial length per image
    L = NB * Lpad                # lane extent of the slab (NB images side by side)
    G = 2 * Ch                   # stacked [rep_conv1-copy ; dwconv-copy] rows

    def kernel(x_ref, w_in2_ref, b_in2_ref, wtap_ref, a_ref, bpk_ref,
               w_out2_ref, b_out_ref, o_ref, slab_ref, h2_ref, op_ref):
        # x_ref:    (NB, C, H*W) f32   lane-dense input block
        # w_in2:    (G, C) bf16        project_in weight, row-doubled;  b_in2: (G,1) f32
        # wtap:     (9, G, 1) f32      per-channel taps, rows [rep1 ; dw], tap k=(dr+1)*3+(dc+1)
        # a_pack:   (G, 1) f32         [1 + rep2_w ; 0]      (rep_conv2 + residual fold)
        # b_pack:   (G, 1) f32         [rep1_b + rep2_b ; dw_b]
        # w_out2:   (C, G) bf16        project_out weight, column-stacked;  b_out: (C,1) f32
        # slab_ref: (G, L) f32         padded hidden slab (scratch)
        # h2_ref:   (G, H*W) f32       project_in output (scratch, per image)
        # op_ref:   (C, L) f32         project_out output in padded layout (scratch)

        # ---- build the zero-padded, lane-flattened hidden slab -------------------
        slab_ref[...] = jnp.zeros(slab_ref.shape, slab_ref.dtype)   # padding lanes = 0
        w_in2 = w_in2_ref[...]
        b_in2 = b_in2_ref[...]
        for n in range(NB):
            xb = x_ref[n].astype(jnp.bfloat16)                      # (C, H*W)
            # project_in: 1x1 conv == channel matmul.  Row-doubled weights emit both
            # depthwise input copies in one MXU pass (no [h|h] concatenate).
            h2_ref[...] = jnp.dot(w_in2, xb,
                                  preferred_element_type=jnp.float32) + b_in2
            # scatter rows into the padded slab (outside the VALU-critical tap loop)
            for hh in range(H):
                dst = n * Lpad + (hh + 1) * Wp + 1
                slab_ref[:, dst:dst + W] = h2_ref[:, hh * W:(hh + 1) * W]

        slab = slab_ref[...]        # loaded ONCE; reused for all taps AND the fold

        # ---- fused depthwise 3x3 pair (rep_conv1 + dwconv): 9 taps ---------------
        # one XLU lane roll (combined row+col shift) + one VALU mad per tap; no masks.
        acc = None
        for dr in (-1, 0, 1):
            for dc in (-1, 0, 1):
                shift = dr * Wp + dc
                win = slab if shift == 0 else pltpu.roll(slab, (-shift) % L, axis=1)
                k = (dr + 1) * 3 + (dc + 1)
                term = win * wtap_ref[k]                            # (G,1) per-row weight
                acc = term if acc is None else acc + term

        # x1 = h + rep_conv1(h) + rep_conv2(h) = acc_top + h*(1+rep2_w) + (rep1_b+rep2_b)
        # x2 = dwconv(h)                        = acc_bot + dw_b
        packed = acc + slab * a_ref[...] + bpk_ref[...]             # rows: [x1 ; x2]

        # Swap the halves ([x2 ; x1]) -- tile-aligned sublane restack -- then one
        # fused GELU pass and the gating multiply.
        swapped = jnp.concatenate([packed[Ch:], packed[:Ch]], axis=0)
        y = _gelu_tanh(swapped) * packed            # [gelu(x2)*x1 ; gelu(x1)*x2]

        # project_out with column-stacked weights: the MXU contraction over 2*Ch sums
        # the two gated halves, i.e. computes project_out(gelu(x2)*x1 + gelu(x1)*x2).
        op_ref[...] = jnp.dot(w_out2_ref[...], y.astype(jnp.bfloat16),
                              preferred_element_type=jnp.float32) + b_out_ref[...]

        # gather interior lanes + identity; the output block itself is lane-dense (H*W)
        for n in range(NB):
            for hh in range(H):
                src = n * Lpad + (hh + 1) * Wp + 1
                o_ref[n, :, hh * W:(hh + 1) * W] = (
                    op_ref[:, src:src + W] + x_ref[n, :, hh * W:(hh + 1) * W])

    return kernel


def feedforward_pallas(x_nchw, params, images_per_step=1):
    N, C, H, W = x_nchw.shape
    Ch = params['w_in'].shape[1]
    G = 2 * Ch
    HW = H * W
    Lpad = (H + 2) * (W + 2)
    NB = images_per_step
    assert N % NB == 0, "batch must be divisible by images_per_step"

    # NCHW -> (N, C, H*W): a free view (no transpose, no extra HBM round trip).
    x = x_nchw.reshape(N, C, HW).astype(jnp.float32)

    # --- fold / pack the (tiny) weights once, wrapper side ---
    w_inT = params['w_in'].T                                                   # (Ch, C)
    w_in2 = jnp.concatenate([w_inT, w_inT], axis=0).astype(jnp.bfloat16)       # (G, C)
    b_in = params['b_in'].reshape(Ch)
    b_in2 = jnp.concatenate([b_in, b_in]).reshape(G, 1)
    wtap = jnp.concatenate([params['rep1_w'].T, params['dw_w'].T], axis=0)     # (G, 9)
    wtap = wtap.T.reshape(9, G, 1)                                             # tap-major
    a_pack = jnp.concatenate([1.0 + params['rep2_w'].reshape(Ch),
                              jnp.zeros((Ch,), jnp.float32)]).reshape(G, 1)
    b_pack = jnp.concatenate([params['rep1_b'].reshape(Ch) + params['rep2_b'].reshape(Ch),
                              params['dw_b'].reshape(Ch)]).reshape(G, 1)
    w_outT = params['w_out'].T                                                 # (C, Ch)
    w_out2 = jnp.concatenate([w_outT, w_outT], axis=1).astype(jnp.bfloat16)    # (C, G)
    b_out = params['b_out'].reshape(C, 1)

    kernel = _make_kernel(H, W, Ch, NB)

    def wspec(shape):
        return pl.BlockSpec(shape, lambda i: (0,) * len(shape))

    in_specs = [
        pl.BlockSpec((NB, C, HW), lambda i: (i, 0, 0)),
        wspec((G, C)), wspec((G, 1)),          # project_in (row-doubled) + bias
        wspec((9, G, 1)),                      # packed [rep1 ; dw] 3x3 taps
        wspec((G, 1)), wspec((G, 1)),          # a_pack, b_pack
        wspec((C, G)), wspec((C, 1)),          # project_out (column-stacked) + bias
    ]
    out_specs = pl.BlockSpec((NB, C, HW), lambda i: (i, 0, 0))

    out = pl.pallas_call(
        kernel,
        grid=(N // NB,),
        in_specs=in_specs,
        out_specs=out_specs,
        out_shape=jax.ShapeDtypeStruct((N, C, HW), jnp.float32),
        scratch_shapes=[
            pltpu.VMEM((G, NB * Lpad), jnp.float32),   # padded hidden slab [rep1 ; dw]
            pltpu.VMEM((G, HW), jnp.float32),          # project_in output (per image)
            pltpu.VMEM((C, NB * Lpad), jnp.float32),   # project_out output (padded)
        ],
        compiler_params=pltpu.CompilerParams(
            dimension_semantics=("parallel",),          # batch steps shard across TCs (v7x)
            vmem_limit_bytes=32 * 1024 * 1024),
    )(x, w_in2, b_in2, wtap, a_pack, b_pack, w_out2, b_out)

    return out.reshape(N, C, H, W)                       # free view back to NCHW


def init_params(key, dim, ffn_expansion_factor):
    """Deterministic synthetic params; BN (eval mode) is fused into the depthwise convs."""
    hidden = int(dim * ffn_expansion_factor)
    eps = 1e-5
    ks = jax.random.split(key, 12)

    # project_in: Conv2d(dim, hidden, 1, bias=True)
    w_in = jax.random.normal(ks[0], (hidden, dim), jnp.float32) * 0.1
    b_in = jax.random.normal(ks[1], (hidden,), jnp.float32) * 0.1
    # rep_conv1: depthwise Conv2d(hidden, hidden, 3, groups=hidden, bias=False) + BN
    rc1_w = jax.random.normal(ks[2], (hidden, 3, 3), jnp.float32) * 0.1
    rc1_mean = jax.random.normal(ks[3], (hidden,), jnp.float32) * 0.1
    rc1_var = jax.random.uniform(ks[4], (hidden,), jnp.float32, 0.5, 1.5)
    s1 = 1.0 / jnp.sqrt(rc1_var + eps)                      # gamma=1 (bn_weight_init), beta=0
    rep1_w = rc1_w * s1[:, None, None]
    rep1_b = -rc1_mean * s1
    # rep_conv2: depthwise Conv2d(hidden, hidden, 1, groups=hidden, bias=False) + BN
    rc2_w = jax.random.normal(ks[5], (hidden,), jnp.float32) * 0.1
    rc2_mean = jax.random.normal(ks[6], (hidden,), jnp.float32) * 0.1
    rc2_var = jax.random.uniform(ks[7], (hidden,), jnp.float32, 0.5, 1.5)
    s2 = 1.0 / jnp.sqrt(rc2_var + eps)
    rep2_w = rc2_w * s2
    rep2_b = -rc2_mean * s2
    # dwconv: depthwise Conv2d(hidden, hidden, 3, groups=hidden, bias=True)
    dw_w = jax.random.normal(ks[8], (hidden, 3, 3), jnp.float32) * 0.1
    dw_b = jax.random.normal(ks[9], (hidden,), jnp.float32) * 0.1
    # project_out: Conv2d(hidden, dim, 1, bias=True)
    w_out = jax.random.normal(ks[10], (dim, hidden), jnp.float32) * 0.1
    b_out = jax.random.normal(ks[11], (dim,), jnp.float32) * 0.1

    return dict(
        w_in=w_in.T,                                         # (dim, hidden)
        b_in=b_in.reshape(1, hidden),
        rep1_w=rep1_w.transpose(1, 2, 0).reshape(9, hidden), # tap-major, channel last
        rep1_b=rep1_b.reshape(1, hidden),
        rep2_w=rep2_w.reshape(1, hidden),
        rep2_b=rep2_b.reshape(1, hidden),
        dw_w=dw_w.transpose(1, 2, 0).reshape(9, hidden),
        dw_b=dw_b.reshape(1, hidden),
        w_out=w_out.T,                                       # (hidden, dim)
        b_out=b_out.reshape(1, dim),
    )


def feedforward_ref(x_nchw, params):
    """Pure-JAX reference (f32, exact erf gelu) for the correctness check."""
    x = jnp.transpose(x_nchw, (0, 2, 3, 1)).astype(jnp.float32)
    N, H, W, C = x.shape
    Ch = params['w_in'].shape[1]
    h = jnp.einsum('nhwc,cd->nhwd', x, params['w_in'],
                   precision=jax.lax.Precision.HIGHEST) + params['b_in'].reshape(Ch)
    hp = jnp.pad(h, ((0, 0), (1, 1), (1, 1), (0, 0)))
    rep1 = jnp.zeros_like(h)
    x2 = jnp.zeros_like(h)
    for di in range(3):
        for dj in range(3):
            win = hp[:, di:di + H, dj:dj + W, :]
            k = di * 3 + dj
            rep1 = rep1 + win * params['rep1_w'][k]
            x2 = x2 + win * params['dw_w'][k]
    rep1 = rep1 + params['rep1_b'].reshape(Ch)
    x2 = x2 + params['dw_b'].reshape(Ch)
    rep2 = h * params['rep2_w'].reshape(Ch) + params['rep2_b'].reshape(Ch)
    x1 = h + rep1 + rep2
    gelu = lambda v: 0.5 * v * (1.0 + jax.lax.erf(v / jnp.sqrt(2.0)))
    y = gelu(x2) * x1 + gelu(x1) * x2
    out = jnp.einsum('nhwd,dc->nhwc', y, params['w_out'],
                     precision=jax.lax.Precision.HIGHEST) + params['b_out'].reshape(C)
    out = out + x
    return jnp.transpose(out, (0, 3, 1, 2))


if __name__ == "__main__":
    key = jax.random.PRNGKey(0)
    dim, ffn_expansion_factor = 4, 2.0      # hidden_features = 8
    N, H, W = 2, 16, 16

    kx, kp = jax.random.split(key)
    x = jax.random.normal(kx, (N, dim, H, W), dtype=jnp.float32)
    params = init_params(kp, dim, ffn_expansion_factor)

    ref = feedforward_ref(x, params)

    # one image per grid step: batch axis stays "parallel" (v7x megacore)
    out = feedforward_pallas(x, params, images_per_step=1)
    out = jax.block_until_ready(out)
    assert out.shape == x.shape
    np.testing.assert_allclose(np.asarray(out), np.asarray(ref), atol=2e-2, rtol=2e-2)

    # whole batch folded into the lane axis of a single grid step
    out2 = jax.block_until_ready(feedforward_pallas(x, params, images_per_step=2))
    np.testing.assert_allclose(np.asarray(out2), np.asarray(ref), atol=2e-2, rtol=2e-2)

    print("KERNEL_OK")
</pallas_src>

<mosaic_0001>
module attributes {stable_mosaic.version = 11 : i64} {
  func.func @kernel(%arg0: i32, %arg1: memref<1x4x256xf32, #tpu.memory_space<vmem>>, %arg2: memref<16x4xbf16, #tpu.memory_space<vmem>>, %arg3: memref<16x1xf32, #tpu.memory_space<vmem>>, %arg4: memref<9x16x1xf32, #tpu.memory_space<vmem>>, %arg5: memref<16x1xf32, #tpu.memory_space<vmem>>, %arg6: memref<16x1xf32, #tpu.memory_space<vmem>>, %arg7: memref<4x16xbf16, #tpu.memory_space<vmem>>, %arg8: memref<4x1xf32, #tpu.memory_space<vmem>>, %arg9: memref<1x4x256xf32, #tpu.memory_space<vmem>>, %arg10: memref<16x324xf32, #tpu.memory_space<vmem>>, %arg11: memref<16x256xf32, #tpu.memory_space<vmem>>, %arg12: memref<4x324xf32, #tpu.memory_space<vmem>>) attributes {dimension_semantics = [#tpu.dimension_semantics<parallel>], iteration_bounds = array<i64: 2>, scalar_prefetch = 0 : i64, scratch_operands = 3 : i64, tpu.core_type = #tpu.core_type<tc>, window_params = [{transform_indices = @transform_0, window_bounds = array<i64: 1, 4, 256>}, {pipeline_mode = #tpu.pipeline_mode<synchronous>, transform_indices = @transform_1, window_bounds = array<i64: 16, 4>}, {pipeline_mode = #tpu.pipeline_mode<synchronous>, transform_indices = @transform_2, window_bounds = array<i64: 16, 1>}, {pipeline_mode = #tpu.pipeline_mode<synchronous>, transform_indices = @transform_3, window_bounds = array<i64: 9, 16, 1>}, {pipeline_mode = #tpu.pipeline_mode<synchronous>, transform_indices = @transform_4, window_bounds = array<i64: 16, 1>}, {pipeline_mode = #tpu.pipeline_mode<synchronous>, transform_indices = @transform_5, window_bounds = array<i64: 16, 1>}, {pipeline_mode = #tpu.pipeline_mode<synchronous>, transform_indices = @transform_6, window_bounds = array<i64: 4, 16>}, {pipeline_mode = #tpu.pipeline_mode<synchronous>, transform_indices = @transform_7, window_bounds = array<i64: 4, 1>}, {transform_indices = @transform_8, window_bounds = array<i64: 1, 4, 256>}]} {
    %cst = arith.constant 0.000000e+00 : f32
    %0 = vector.broadcast %cst : f32 to vector<16x324xf32>
    %c0 = arith.constant 0 : index
    %c0_0 = arith.constant 0 : index
    %1 = vector.load %arg10[%c0, %c0_0] : memref<16x324xf32, #tpu.memory_space<vmem>>, vector<16x324xf32>
    tpu.vector_store %arg10[%c0, %c0_0], %0 {strides = array<i32>} : memref<16x324xf32, #tpu.memory_space<vmem>>, vector<16x324xf32>,
    %c0_1 = arith.constant 0 : index
    %c0_2 = arith.constant 0 : index
    %2 = vector.load %arg2[%c0_1, %c0_2] : memref<16x4xbf16, #tpu.memory_space<vmem>>, vector<16x4xbf16>
    %c0_3 = arith.constant 0 : index
    %c0_4 = arith.constant 0 : index
    %3 = vector.load %arg3[%c0_3, %c0_4] : memref<16x1xf32, #tpu.memory_space<vmem>>, vector<16x1xf32>
    %c0_5 = arith.constant 0 : index
    %c0_6 = arith.constant 0 : index
    %c0_7 = arith.constant 0 : index
    %4 = vector.load %arg1[%c0_5, %c0_6, %c0_7] : memref<1x4x256xf32, #tpu.memory_space<vmem>>, vector<1x4x256xf32>
    %5 = vector.shape_cast %4 : vector<1x4x256xf32> to vector<4x256xf32>
    %6 = arith.truncf %5 : vector<4x256xf32> to vector<4x256xbf16>
    %cst_8 = arith.constant dense<0.000000e+00> : vector<16x256xf32>
    %7 = tpu.matmul %2, %6, %cst_8 {dimension_numbers = #tpu.dot_dimension_numbers<[1], [0], [0], [1], [0, 0, 1, 1], [], []>} : vector<16x4xbf16>, vector<4x256xbf16>, vector<16x256xf32> -> vector<16x256xf32>
    %8 = vector.broadcast %3 : vector<16x1xf32> to vector<16x256xf32>
    %9 = arith.addf %7, %8 : vector<16x256xf32>
    %c0_9 = arith.constant 0 : index
    %c0_10 = arith.constant 0 : index
    %10 = vector.load %arg11[%c0_9, %c0_10] : memref<16x256xf32, #tpu.memory_space<vmem>>, vector<16x256xf32>
    tpu.vector_store %arg11[%c0_9, %c0_10], %9 {strides = array<i32>} : memref<16x256xf32, #tpu.memory_space<vmem>>, vector<16x256xf32>,
    %c0_11 = arith.constant 0 : index
    %c0_12 = arith.constant 0 : index
    %11 = vector.load %arg11[%c0_11, %c0_12] : memref<16x256xf32, #tpu.memory_space<vmem>>, vector<16x16xf32>
    %c0_13 = arith.constant 0 : index
    %c19 = arith.constant 19 : index
    %12 = vector.load %arg10[%c0_13, %c19] : memref<16x324xf32, #tpu.memory_space<vmem>>, vector<16x16xf32>
    tpu.vector_store %arg10[%c0_13, %c19], %11 {strides = array<i32>} : memref<16x324xf32, #tpu.memory_space<vmem>>, vector<16x16xf32>,
    %c0_14 = arith.constant 0 : index
    %c16 = arith.constant 16 : index
    %13 = vector.load %arg11[%c0_14, %c16] : memref<16x256xf32, #tpu.memory_space<vmem>>, vector<16x16xf32>
    %c0_15 = arith.constant 0 : index
    %c37 = arith.constant 37 : index
    %14 = vector.load %arg10[%c0_15, %c37] : memref<16x324xf32, #tpu.memory_space<vmem>>, vector<16x16xf32>
    tpu.vector_store %arg10[%c0_15, %c37], %13 {strides = array<i32>} : memref<16x324xf32, #tpu.memory_space<vmem>>, vector<16x16xf32>,
    %c0_16 = arith.constant 0 : index
    %c32 = arith.constant 32 : index
    %15 = vector.load %arg11[%c0_16, %c32] : memref<16x256xf32, #tpu.memory_space<vmem>>, vector<16x16xf32>
    %c0_17 = arith.constant 0 : index
    %c55 = arith.constant 55 : index
    %16 = vector.load %arg10[%c0_17, %c55] : memref<16x324xf32, #tpu.memory_space<vmem>>, vector<16x16xf32>
    tpu.vector_store %arg10[%c0_17, %c55], %15 {strides = array<i32>} : memref<16x324xf32, #tpu.memory_space<vmem>>, vector<16x16xf32>,
    %c0_18 = arith.constant 0 : index
    %c48 = arith.constant 48 : index
    %17 = vector.load %arg11[%c0_18, %c48] : memref<16x256xf32, #tpu.memory_space<vmem>>, vector<16x16xf32>
    %c0_19 = arith.constant 0 : index
    %c73 = arith.constant 73 : index
    %18 = vector.load %arg10[%c0_19, %c73] : memref<16x324xf32, #tpu.memory_space<vmem>>, vector<16x16xf32>
    tpu.vector_store %arg10[%c0_19, %c73], %17 {strides = array<i32>} : memref<16x324xf32, #tpu.memory_space<vmem>>, vector<16x16xf32>,
    %c0_20 = arith.constant 0 : index
    %c64 = arith.constant 64 : index
    %19 = vector.load %arg11[%c0_20, %c64] : memref<16x256xf32, #tpu.memory_space<vmem>>, vector<16x16xf32>
    %c0_21 = arith.constant 0 : index
    %c91 = arith.constant 91 : index
    %20 = vector.load %arg10[%c0_21, %c91] : memref<16x324xf32, #tpu.memory_space<vmem>>, vector<16x16xf32>
    tpu.vector_store %arg10[%c0_21, %c91], %19 {strides = array<i32>} : memref<16x324xf32, #tpu.memory_space<vmem>>, vector<16x16xf32>,
    %c0_22 = arith.constant 0 : index
    %c80 = arith.constant 80 : index
    %21 = vector.load %arg11[%c0_22, %c80] : memref<16x256xf32, #tpu.memory_space<vmem>>, vector<16x16xf32>
    %c0_23 = arith.constant 0 : index
    %c109 = arith.constant 109 : index
    %22 = vector.load %arg10[%c0_23, %c109] : memref<16x324xf32, #tpu.memory_space<vmem>>, vector<16x16xf32>
    tpu.vector_store %arg10[%c0_23, %c109], %21 {strides = array<i32>} : memref<16x324xf32, #tpu.memory_space<vmem>>, vector<16x16xf32>,
    %c0_24 = arith.constant 0 : index
    %c96 = arith.constant 96 : index
    %23 = vector.load %arg11[%c0_24, %c96] : memref<16x256xf32, #tpu.memory_space<vmem>>, vector<16x16xf32>
    %c0_25 = arith.constant 0 : index
    %c127 = arith.constant 127 : index
    %24 = vector.load %arg10[%c0_25, %c127] : memref<16x324xf32, #tpu.memory_space<vmem>>, vector<16x16xf32>
    tpu.vector_store %arg10[%c0_25, %c127], %23 {strides = array<i32>} : memref<16x324xf32, #tpu.memory_space<vmem>>, vector<16x16xf32>,
    %c0_26 = arith.constant 0 : index
    %c112 = arith.constant 112 : index
    %25 = vector.load %arg11[%c0_26, %c112] : memref<16x256xf32, #tpu.memory_space<vmem>>, vector<16x16xf32>
    %c0_27 = arith.constant 0 : index
    %c145 = arith.constant 145 : index
    %26 = vector.load %arg10[%c0_27, %c145] : memref<16x324xf32, #tpu.memory_space<vmem>>, vector<16x16xf32>
    tpu.vector_store %arg10[%c0_27, %c145], %25 {strides = array<i32>} : memref<16x324xf32, #tpu.memory_space<vmem>>, vector<16x16xf32>,
    %c0_28 = arith.constant 0 : index
    %c128 = arith.constant 128 : index
    %27 = vector.load %arg11[%c0_28, %c128] : memref<16x256xf32, #tpu.memory_space<vmem>>, vector<16x16xf32>
    %c0_29 = arith.constant 0 : index
    %c163 = arith.constant 163 : index
    %28 = vector.load %arg10[%c0_29, %c163] : memref<16x324xf32, #tpu.memory_space<vmem>>, vector<16x16xf32>
    tpu.vector_store %arg10[%c0_29, %c163], %27 {strides = array<i32>} : memref<16x324xf32, #tpu.memory_space<vmem>>, vector<16x16xf32>,
    %c0_30 = arith.constant 0 : index
    %c144 = arith.constant 144 : index
    %29 = vector.load %arg11[%c0_30, %c144] : memref<16x256xf32, #tpu.memory_space<vmem>>, vector<16x16xf32>
    %c0_31 = arith.constant 0 : index
    %c181 = arith.constant 181 : index
    %30 = vector.load %arg10[%c0_31, %c181] : memref<16x324xf32, #tpu.memory_space<vmem>>, vector<16x16xf32>
    tpu.vector_store %arg10[%c0_31, %c181], %29 {strides = array<i32>} : memref<16x324xf32, #tpu.memory_space<vmem>>, vector<16x16xf32>,
    %c0_32 = arith.constant 0 : index
    %c160 = arith.constant 160 : index
    %31 = vector.load %arg11[%c0_32, %c160] : memref<16x256xf32, #tpu.memory_space<vmem>>, vector<16x16xf32>
    %c0_33 = arith.constant 0 : index
    %c199 = arith.constant 199 : index
    %32 = vector.load %arg10[%c0_33, %c199] : memref<16x324xf32, #tpu.memory_space<vmem>>, vector<16x16xf32>
    tpu.vector_store %arg10[%c0_33, %c199], %31 {strides = array<i32>} : memref<16x324xf32, #tpu.memory_space<vmem>>, vector<16x16xf32>,
    %c0_34 = arith.constant 0 : index
    %c176 = arith.constant 176 : index
    %33 = vector.load %arg11[%c0_34, %c176] : memref<16x256xf32, #tpu.memory_space<vmem>>, vector<16x16xf32>
    %c0_35 = arith.constant 0 : index
    %c217 = arith.constant 217 : index
    %34 = vector.load %arg10[%c0_35, %c217] : memref<16x324xf32, #tpu.memory_space<vmem>>, vector<16x16xf32>
    tpu.vector_store %arg10[%c0_35, %c217], %33 {strides = array<i32>} : memref<16x324xf32, #tpu.memory_space<vmem>>, vector<16x16xf32>,
    %c0_36 = arith.constant 0 : index
    %c192 = arith.constant 192 : index
    %35 = vector.load %arg11[%c0_36, %c192] : memref<16x256xf32, #tpu.memory_space<vmem>>, vector<16x16xf32>
    %c0_37 = arith.constant 0 : index
    %c235 = arith.constant 235 : index
    %36 = vector.load %arg10[%c0_37, %c235] : memref<16x324xf32, #tpu.memory_space<vmem>>, vector<16x16xf32>
    tpu.vector_store %arg10[%c0_37, %c235], %35 {strides = array<i32>} : memref<16x324xf32, #tpu.memory_space<vmem>>, vector<16x16xf32>,
    %c0_38 = arith.constant 0 : index
    %c208 = arith.constant 208 : index
    %37 = vector.load %arg11[%c0_38, %c208] : memref<16x256xf32, #tpu.memory_space<vmem>>, vector<16x16xf32>
    %c0_39 = arith.constant 0 : index
    %c253 = arith.constant 253 : index
    %38 = vector.load %arg10[%c0_39, %c253] : memref<16x324xf32, #tpu.memory_space<vmem>>, vector<16x16xf32>
    tpu.vector_store %arg10[%c0_39, %c253], %37 {strides = array<i32>} : memref<16x324xf32, #tpu.memory_space<vmem>>, vector<16x16xf32>,
    %c0_40 = arith.constant 0 : index
    %c224 = arith.constant 224 : index
    %39 = vector.load %arg11[%c0_40, %c224] : memref<16x256xf32, #tpu.memory_space<vmem>>, vector<16x16xf32>
    %c0_41 = arith.constant 0 : index
    %c271 = arith.constant 271 : index
    %40 = vector.load %arg10[%c0_41, %c271] : memref<16x324xf32, #tpu.memory_space<vmem>>, vector<16x16xf32>
    tpu.vector_store %arg10[%c0_41, %c271], %39 {strides = array<i32>} : memref<16x324xf32, #tpu.memory_space<vmem>>, vector<16x16xf32>,
    %c0_42 = arith.constant 0 : index
    %c240 = arith.constant 240 : index
    %41 = vector.load %arg11[%c0_42, %c240] : memref<16x256xf32, #tpu.memory_space<vmem>>, vector<16x16xf32>
    %c0_43 = arith.constant 0 : index
    %c289 = arith.constant 289 : index
    %42 = vector.load %arg10[%c0_43, %c289] : memref<16x324xf32, #tpu.memory_space<vmem>>, vector<16x16xf32>
    tpu.vector_store %arg10[%c0_43, %c289], %41 {strides = array<i32>} : memref<16x324xf32, #tpu.memory_space<vmem>>, vector<16x16xf32>,
    %c0_44 = arith.constant 0 : index
    %c0_45 = arith.constant 0 : index
    %43 = vector.load %arg10[%c0_44, %c0_45] : memref<16x324xf32, #tpu.memory_space<vmem>>, vector<16x324xf32>
    %c19_i32 = arith.constant 19 : i32
    %44 = tpu.dynamic_rotate %43 by %c19_i32 dim 1 : vector<16x324xf32>, i32 -> vector<16x324xf32>
    %c0_46 = arith.constant 0 : index
    %c0_47 = arith.constant 0 : index
    %c0_48 = arith.constant 0 : index
    %45 = vector.load %arg4[%c0_46, %c0_47, %c0_48] : memref<9x16x1xf32, #tpu.memory_space<vmem>>, vector<1x16x1xf32>
    %46 = vector.shape_cast %45 : vector<1x16x1xf32> to vector<16x1xf32>
    %47 = vector.broadcast %46 : vector<16x1xf32> to vector<16x324xf32>
    %48 = arith.mulf %44, %47 : vector<16x324xf32>
    %c18_i32 = arith.constant 18 : i32
    %49 = tpu.dynamic_rotate %43 by %c18_i32 dim 1 : vector<16x324xf32>, i32 -> vector<16x324xf32>
    %c1 = arith.constant 1 : index
    %c0_49 = arith.constant 0 : index
    %c0_50 = arith.constant 0 : index
    %50 = vector.load %arg4[%c1, %c0_49, %c0_50] : memref<9x16x1xf32, #tpu.memory_space<vmem>>, vector<1x16x1xf32>
    %51 = vector.shape_cast %50 : vector<1x16x1xf32> to vector<16x1xf32>
    %52 = vector.broadcast %51 : vector<16x1xf32> to vector<16x324xf32>
    %53 = arith.mulf %49, %52 : vector<16x324xf32>
    %54 = arith.addf %48, %53 : vector<16x324xf32>
    %c17_i32 = arith.constant 17 : i32
    %55 = tpu.dynamic_rotate %43 by %c17_i32 dim 1 : vector<16x324xf32>, i32 -> vector<16x324xf32>
    %c2 = arith.constant 2 : index
    %c0_51 = arith.constant 0 : index
    %c0_52 = arith.constant 0 : index
    %56 = vector.load %arg4[%c2, %c0_51, %c0_52] : memref<9x16x1xf32, #tpu.memory_space<vmem>>, vector<1x16x1xf32>
    %57 = vector.shape_cast %56 : vector<1x16x1xf32> to vector<16x1xf32>
    %58 = vector.broadcast %57 : vector<16x1xf32> to vector<16x324xf32>
    %59 = arith.mulf %55, %58 : vector<16x324xf32>
    %60 = arith.addf %54, %59 : vector<16x324xf32>
    %c1_i32 = arith.constant 1 : i32
    %61 = tpu.dynamic_rotate %43 by %c1_i32 dim 1 : vector<16x324xf32>, i32 -> vector<16x324xf32>
    %c3 = arith.constant 3 : index
    %c0_53 = arith.constant 0 : index
    %c0_54 = arith.constant 0 : index
    %62 = vector.load %arg4[%c3, %c0_53, %c0_54] : memref<9x16x1xf32, #tpu.memory_space<vmem>>, vector<1x16x1xf32>
    %63 = vector.shape_cast %62 : vector<1x16x1xf32> to vector<16x1xf32>
    %64 = vector.broadcast %63 : vector<16x1xf32> to vector<16x324xf32>
    %65 = arith.mulf %61, %64 : vector<16x324xf32>
    %66 = arith.addf %60, %65 : vector<16x324xf32>
    %c4 = arith.constant 4 : index
    %c0_55 = arith.constant 0 : index
    %c0_56 = arith.constant 0 : index
    %67 = vector.load %arg4[%c4, %c0_55, %c0_56] : memref<9x16x1xf32, #tpu.memory_space<vmem>>, vector<1x16x1xf32>
    %68 = vector.shape_cast %67 : vector<1x16x1xf32> to vector<16x1xf32>
    %69 = vector.broadcast %68 : vector<16x1xf32> to vector<16x324xf32>
    %70 = arith.mulf %43, %69 : vector<16x324xf32>
    %71 = arith.addf %66, %70 : vector<16x324xf32>
    %c323_i32 = arith.constant 323 : i32
    %72 = tpu.dynamic_rotate %43 by %c323_i32 dim 1 : vector<16x324xf32>, i32 -> vector<16x324xf32>
    %c5 = arith.constant 5 : index
    %c0_57 = arith.constant 0 : index
    %c0_58 = arith.constant 0 : index
    %73 = vector.load %arg4[%c5, %c0_57, %c0_58] : memref<9x16x1xf32, #tpu.memory_space<vmem>>, vector<1x16x1xf32>
    %74 = vector.shape_cast %73 : vector<1x16x1xf32> to vector<16x1xf32>
    %75 = vector.broadcast %74 : vector<16x1xf32> to vector<16x324xf32>
    %76 = arith.mulf %72, %75 : vector<16x324xf32>
    %77 = arith.addf %71, %76 : vector<16x324xf32>
    %c307_i32 = arith.constant 307 : i32
    %78 = tpu.dynamic_rotate %43 by %c307_i32 dim 1 : vector<16x324xf32>, i32 -> vector<16x324xf32>
    %c6 = arith.constant 6 : index
    %c0_59 = arith.constant 0 : index
    %c0_60 = arith.constant 0 : index
    %79 = vector.load %arg4[%c6, %c0_59, %c0_60] : memref<9x16x1xf32, #tpu.memory_space<vmem>>, vector<1x16x1xf32>
    %80 = vector.shape_cast %79 : vector<1x16x1xf32> to vector<16x1xf32>
    %81 = vector.broadcast %80 : vector<16x1xf32> to vector<16x324xf32>
    %82 = arith.mulf %78, %81 : vector<16x324xf32>
    %83 = arith.addf %77, %82 : vector<16x324xf32>
    %c306_i32 = arith.constant 306 : i32
    %84 = tpu.dynamic_rotate %43 by %c306_i32 dim 1 : vector<16x324xf32>, i32 -> vector<16x324xf32>
    %c7 = arith.constant 7 : index
    %c0_61 = arith.constant 0 : index
    %c0_62 = arith.constant 0 : index
    %85 = vector.load %arg4[%c7, %c0_61, %c0_62] : memref<9x16x1xf32, #tpu.memory_space<vmem>>, vector<1x16x1xf32>
    %86 = vector.shape_cast %85 : vector<1x16x1xf32> to vector<16x1xf32>
    %87 = vector.broadcast %86 : vector<16x1xf32> to vector<16x324xf32>
    %88 = arith.mulf %84, %87 : vector<16x324xf32>
    %89 = arith.addf %83, %88 : vector<16x324xf32>
    %c305_i32 = arith.constant 305 : i32
    %90 = tpu.dynamic_rotate %43 by %c305_i32 dim 1 : vector<16x324xf32>, i32 -> vector<16x324xf32>
    %c8 = arith.constant 8 : index
    %c0_63 = arith.constant 0 : index
    %c0_64 = arith.constant 0 : index
    %91 = vector.load %arg4[%c8, %c0_63, %c0_64] : memref<9x16x1xf32, #tpu.memory_space<vmem>>, vector<1x16x1xf32>
    %92 = vector.shape_cast %91 : vector<1x16x1xf32> to vector<16x1xf32>
    %93 = vector.broadcast %92 : vector<16x1xf32> to vector<16x324xf32>
    %94 = arith.mulf %90, %93 : vector<16x324xf32>
    %95 = arith.addf %89, %94 : vector<16x324xf32>
    %c0_65 = arith.constant 0 : index
    %c0_66 = arith.constant 0 : index
    %96 = vector.load %arg5[%c0_65, %c0_66] : memref<16x1xf32, #tpu.memory_space<vmem>>, vector<16x1xf32>
    %97 = vector.broadcast %96 : vector<16x1xf32> to vector<16x324xf32>
    %98 = arith.mulf %43, %97 : vector<16x324xf32>
    %99 = arith.addf %95, %98 : vector<16x324xf32>
    %c0_67 = arith.constant 0 : index
    %c0_68 = arith.constant 0 : index
    %100 = vector.load %arg6[%c0_67, %c0_68] : memref<16x1xf32, #tpu.memory_space<vmem>>, vector<16x1xf32>
    %101 = vector.broadcast %100 : vector<16x1xf32> to vector<16x324xf32>
    %102 = arith.addf %99, %101 : vector<16x324xf32>
    %103 = vector.extract_strided_slice %102 {offsets = [8, 0], sizes = [8, 324], strides = [1, 1]} : vector<16x324xf32> to vector<8x324xf32>
    %104 = vector.extract_strided_slice %102 {offsets = [0, 0], sizes = [8, 324], strides = [1, 1]} : vector<16x324xf32> to vector<8x324xf32>
    %105 = tpu.concatenate %103, %104 in 0 : vector<8x324xf32>, vector<8x324xf32> -> vector<16x324xf32>
    %cst_69 = arith.constant 5.000000e-01 : f32
    %106 = vector.broadcast %cst_69 : f32 to vector<16x324xf32>
    %107 = arith.mulf %106, %105 : vector<16x324xf32>
    %108 = arith.mulf %105, %105 : vector<16x324xf32>
    %109 = arith.mulf %108, %105 : vector<16x324xf32>
    %cst_70 = arith.constant 4.471500e-02 : f32
    %110 = vector.broadcast %cst_70 : f32 to vector<16x324xf32>
    %111 = arith.mulf %110, %109 : vector<16x324xf32>
    %112 = arith.addf %105, %111 : vector<16x324xf32>
    %cst_71 = arith.constant 0.797884583 : f32
    %113 = vector.broadcast %cst_71 : f32 to vector<16x324xf32>
    %114 = arith.mulf %113, %112 : vector<16x324xf32>
    %115 = math.tanh %114 : vector<16x324xf32>
    %cst_72 = arith.constant 1.000000e+00 : f32
    %116 = vector.broadcast %cst_72 : f32 to vector<16x324xf32>
    %117 = arith.addf %116, %115 : vector<16x324xf32>
    %118 = arith.mulf %107, %117 : vector<16x324xf32>
    %119 = arith.mulf %118, %102 : vector<16x324xf32>
    %c0_73 = arith.constant 0 : index
    %c0_74 = arith.constant 0 : index
    %120 = vector.load %arg7[%c0_73, %c0_74] : memref<4x16xbf16, #tpu.memory_space<vmem>>, vector<4x16xbf16>
    %121 = arith.truncf %119 : vector<16x324xf32> to vector<16x324xbf16>
    %cst_75 = arith.constant dense<0.000000e+00> : vector<4x324xf32>
    %122 = tpu.matmul %120, %121, %cst_75 {dimension_numbers = #tpu.dot_dimension_numbers<[1], [0], [0], [1], [0, 0, 1, 1], [], []>} : vector<4x16xbf16>, vector<16x324xbf16>, vector<4x324xf32> -> vector<4x324xf32>
    %c0_76 = arith.constant 0 : index
    %c0_77 = arith.constant 0 : index
    %123 = vector.load %arg8[%c0_76, %c0_77] : memref<4x1xf32, #tpu.memory_space<vmem>>, vector<4x1xf32>
    %124 = vector.broadcast %123 : vector<4x1xf32> to vector<4x324xf32>
    %125 = arith.addf %122, %124 : vector<4x324xf32>
    %c0_78 = arith.constant 0 : index
    %c0_79 = arith.constant 0 : index
    %126 = vector.load %arg12[%c0_78, %c0_79] : memref<4x324xf32, #tpu.memory_space<vmem>>, vector<4x324xf32>
    tpu.vector_store %arg12[%c0_78, %c0_79], %125 {strides = array<i32>} : memref<4x324xf32, #tpu.memory_space<vmem>>, vector<4x324xf32>,
    %c0_80 = arith.constant 0 : index
    %c19_81 = arith.constant 19 : index
    %127 = vector.load %arg12[%c0_80, %c19_81] : memref<4x324xf32, #tpu.memory_space<vmem>>, vector<4x16xf32>
    %c0_82 = arith.constant 0 : index
    %c0_83 = arith.constant 0 : index
    %c0_84 = arith.constant 0 : index
    %128 = vector.load %arg1[%c0_82, %c0_83, %c0_84] : memref<1x4x256xf32, #tpu.memory_space<vmem>>, vector<1x4x16xf32>
    %129 = vector.shape_cast %128 : vector<1x4x16xf32> to vector<4x16xf32>
    %130 = arith.addf %127, %129 : vector<4x16xf32>
    %c0_85 = arith.constant 0 : index
    %c0_86 = arith.constant 0 : index
    %c0_87 = arith.constant 0 : index
    %131 = vector.load %arg9[%c0_85, %c0_86, %c0_87] : memref<1x4x256xf32, #tpu.memory_space<vmem>>, vector<1x4x16xf32>
    %132 = vector.shape_cast %131 : vector<1x4x16xf32> to vector<4x16xf32>
    %133 = vector.shape_cast %130 : vector<4x16xf32> to vector<1x4x16xf32>
    tpu.vector_store %arg9[%c0_85, %c0_86, %c0_87], %133 {strides = array<i32>} : memref<1x4x256xf32, #tpu.memory_space<vmem>>, vector<1x4x16xf32>,
    %c0_88 = arith.constant 0 : index
    %c37_89 = arith.constant 37 : index
    %134 = vector.load %arg12[%c0_88, %c37_89] : memref<4x324xf32, #tpu.memory_space<vmem>>, vector<4x16xf32>
    %c0_90 = arith.constant 0 : index
    %c0_91 = arith.constant 0 : index
    %c16_92 = arith.constant 16 : index
    %135 = vector.load %arg1[%c0_90, %c0_91, %c16_92] : memref<1x4x256xf32, #tpu.memory_space<vmem>>, vector<1x4x16xf32>
    %136 = vector.shape_cast %135 : vector<1x4x16xf32> to vector<4x16xf32>
    %137 = arith.addf %134, %136 : vector<4x16xf32>
    %c0_93 = arith.constant 0 : index
    %c0_94 = arith.constant 0 : index
    %c16_95 = arith.constant 16 : index
    %138 = vector.load %arg9[%c0_93, %c0_94, %c16_95] : memref<1x4x256xf32, #tpu.memory_space<vmem>>, vector<1x4x16xf32>
    %139 = vector.shape_cast %138 : vector<1x4x16xf32> to vector<4x16xf32>
    %140 = vector.shape_cast %137 : vector<4x16xf32> to vector<1x4x16xf32>
    tpu.vector_store %arg9[%c0_93, %c0_94, %c16_95], %140 {strides = array<i32>} : memref<1x4x256xf32, #tpu.memory_space<vmem>>, vector<1x4x16xf32>,
    %c0_96 = arith.constant 0 : index
    %c55_97 = arith.constant 55 : index
    %141 = vector.load %arg12[%c0_96, %c55_97] : memref<4x324xf32, #tpu.memory_space<vmem>>, vector<4x16xf32>
    %c0_98 = arith.constant 0 : index
    %c0_99 = arith.constant 0 : index
    %c32_100 = arith.constant 32 : index
    %142 = vector.load %arg1[%c0_98, %c0_99, %c32_100] : memref<1x4x256xf32, #tpu.memory_space<vmem>>, vector<1x4x16xf32>
    %143 = vector.shape_cast %142 : vector<1x4x16xf32> to vector<4x16xf32>
    %144 = arith.addf %141, %143 : vector<4x16xf32>
    %c0_101 = arith.constant 0 : index
    %c0_102 = arith.constant 0 : index
    %c32_103 = arith.constant 32 : index
    %145 = vector.load %arg9[%c0_101, %c0_102, %c32_103] : memref<1x4x256xf32, #tpu.memory_space<vmem>>, vector<1x4x16xf32>
    %146 = vector.shape_cast %145 : vector<1x4x16xf32> to vector<4x16xf32>
    %147 = vector.shape_cast %144 : vector<4x16xf32> to vector<1x4x16xf32>
    tpu.vector_store %arg9[%c0_101, %c0_102, %c32_103], %147 {strides = array<i32>} : memref<1x4x256xf32, #tpu.memory_space<vmem>>, vector<1x4x16xf32>,
    %c0_104 = arith.constant 0 : index
    %c73_105 = arith.constant 73 : index
    %148 = vector.load %arg12[%c0_104, %c73_105] : memref<4x324xf32, #tpu.memory_space<vmem>>, vector<4x16xf32>
    %c0_106 = arith.constant 0 : index
    %c0_107 = arith.constant 0 : index
    %c48_108 = arith.constant 48 : index
    %149 = vector.load %arg1[%c0_106, %c0_107, %c48_108] : memref<1x4x256xf32, #tpu.memory_space<vmem>>, vector<1x4x16xf32>
    %150 = vector.shape_cast %149 : vector<1x4x16xf32> to vector<4x16xf32>
    %151 = arith.addf %148, %150 : vector<4x16xf32>
    %c0_109 = arith.constant 0 : index
    %c0_110 = arith.constant 0 : index
    %c48_111 = arith.constant 48 : index
    %152 = vector.load %arg9[%c0_109, %c0_110, %c48_111] : memref<1x4x256xf32, #tpu.memory_space<vmem>>, vector<1x4x16xf32>
    %153 = vector.shape_cast %152 : vector<1x4x16xf32> to vector<4x16xf32>
    %154 = vector.shape_cast %151 : vector<4x16xf32> to vector<1x4x16xf32>
    tpu.vector_store %arg9[%c0_109, %c0_110, %c48_111], %154 {strides = array<i32>} : memref<1x4x256xf32, #tpu.memory_space<vmem>>, vector<1x4x16xf32>,
    %c0_112 = arith.constant 0 : index
    %c91_113 = arith.constant 91 : index
    %155 = vector.load %arg12[%c0_112, %c91_113] : memref<4x324xf32, #tpu.memory_space<vmem>>, vector<4x16xf32>
    %c0_114 = arith.constant 0 : index
    %c0_115 = arith.constant 0 : index
    %c64_116 = arith.constant 64 : index
    %156 = vector.load %arg1[%c0_114, %c0_115, %c64_116] : memref<1x4x256xf32, #tpu.memory_space<vmem>>, vector<1x4x16xf32>
    %157 = vector.shape_cast %156 : vector<1x4x16xf32> to vector<4x16xf32>
    %158 = arith.addf %155, %157 : vector<4x16xf32>
    %c0_117 = arith.constant 0 : index
    %c0_118 = arith.constant 0 : index
    %c64_119 = arith.constant 64 : index
    %159 = vector.load %arg9[%c0_117, %c0_118, %c64_119] : memref<1x4x256xf32, #tpu.memory_space<vmem>>, vector<1x4x16xf32>
    %160 = vector.shape_cast %159 : vector<1x4x16xf32> to vector<4x16xf32>
    %161 = vector.shape_cast %158 : vector<4x16xf32> to vector<1x4x16xf32>
    tpu.vector_store %arg9[%c0_117, %c0_118, %c64_119], %161 {strides = array<i32>} : memref<1x4x256xf32, #tpu.memory_space<vmem>>, vector<1x4x16xf32>,
    %c0_120 = arith.constant 0 : index
    %c109_121 = arith.constant 109 : index
    %162 = vector.load %arg12[%c0_120, %c109_121] : memref<4x324xf32, #tpu.memory_space<vmem>>, vector<4x16xf32>
    %c0_122 = arith.constant 0 : index
    %c0_123 = arith.constant 0 : index
    %c80_124 = arith.constant 80 : index
    %163 = vector.load %arg1[%c0_122, %c0_123, %c80_124] : memref<1x4x256xf32, #tpu.memory_space<vmem>>, vector<1x4x16xf32>
    %164 = vector.shape_cast %163 : vector<1x4x16xf32> to vector<4x16xf32>
    %165 = arith.addf %162, %164 : vector<4x16xf32>
    %c0_125 = arith.constant 0 : index
    %c0_126 = arith.constant 0 : index
    %c80_127 = arith.constant 80 : index
    %166 = vector.load %arg9[%c0_125, %c0_126, %c80_127] : memref<1x4x256xf32, #tpu.memory_space<vmem>>, vector<1x4x16xf32>
    %167 = vector.shape_cast %166 : vector<1x4x16xf32> to vector<4x16xf32>
    %168 = vector.shape_cast %165 : vector<4x16xf32> to vector<1x4x16xf32>
    tpu.vector_store %arg9[%c0_125, %c0_126, %c80_127], %168 {strides = array<i32>} : memref<1x4x256xf32, #tpu.memory_space<vmem>>, vector<1x4x16xf32>,
    %c0_128 = arith.constant 0 : index
    %c127_129 = arith.constant 127 : index
    %169 = vector.load %arg12[%c0_128, %c127_129] : memref<4x324xf32, #tpu.memory_space<vmem>>, vector<4x16xf32>
    %c0_130 = arith.constant 0 : index
    %c0_131 = arith.constant 0 : index
    %c96_132 = arith.constant 96 : index
    %170 = vector.load %arg1[%c0_130, %c0_131, %c96_132] : memref<1x4x256xf32, #tpu.memory_space<vmem>>, vector<1x4x16xf32>
    %171 = vector.shape_cast %170 : vector<1x4x16xf32> to vector<4x16xf32>
    %172 = arith.addf %169, %171 : vector<4x16xf32>
    %c0_133 = arith.constant 0 : index
    %c0_134 = arith.constant 0 : index
    %c96_135 = arith.constant 96 : index
    %173 = vector.load %arg9[%c0_133, %c0_134, %c96_135] : memref<1x4x256xf32, #tpu.memory_space<vmem>>, vector<1x4x16xf32>
    %174 = vector.shape_cast %173 : vector<1x4x16xf32> to vector<4x16xf32>
    %175 = vector.shape_cast %172 : vector<4x16xf32> to vector<1x4x16xf32>
    tpu.vector_store %arg9[%c0_133, %c0_134, %c96_135], %175 {strides = array<i32>} : memref<1x4x256xf32, #tpu.memory_space<vmem>>, vector<1x4x16xf32>,
    %c0_136 = arith.constant 0 : index
    %c145_137 = arith.constant 145 : index
    %176 = vector.load %arg12[%c0_136, %c145_137] : memref<4x324xf32, #tpu.memory_space<vmem>>, vector<4x16xf32>
    %c0_138 = arith.constant 0 : index
    %c0_139 = arith.constant 0 : index
    %c112_140 = arith.constant 112 : index
    %177 = vector.load %arg1[%c0_138, %c0_139, %c112_140] : memref<1x4x256xf32, #tpu.memory_space<vmem>>, vector<1x4x16xf32>
    %178 = vector.shape_cast %177 : vector<1x4x16xf32> to vector<4x16xf32>
    %179 = arith.addf %176, %178 : vector<4x16xf32>
    %c0_141 = arith.constant 0 : index
    %c0_142 = arith.constant 0 : index
    %c112_143 = arith.constant 112 : index
    %180 = vector.load %arg9[%c0_141, %c0_142, %c112_143] : memref<1x4x256xf32, #tpu.memory_space<vmem>>, vector<1x4x16xf32>
    %181 = vector.shape_cast %180 : vector<1x4x16xf32> to vector<4x16xf32>
    %182 = vector.shape_cast %179 : vector<4x16xf32> to vector<1x4x16xf32>
    tpu.vector_store %arg9[%c0_141, %c0_142, %c112_143], %182 {strides = array<i32>} : memref<1x4x256xf32, #tpu.memory_space<vmem>>, vector<1x4x16xf32>,
    %c0_144 = arith.constant 0 : index
    %c163_145 = arith.constant 163 : index
    %183 = vector.load %arg12[%c0_144, %c163_145] : memref<4x324xf32, #tpu.memory_space<vmem>>, vector<4x16xf32>
    %c0_146 = arith.constant 0 : index
    %c0_147 = arith.constant 0 : index
    %c128_148 = arith.constant 128 : index
    %184 = vector.load %arg1[%c0_146, %c0_147, %c128_148] : memref<1x4x256xf32, #tpu.memory_space<vmem>>, vector<1x4x16xf32>
    %185 = vector.shape_cast %184 : vector<1x4x16xf32> to vector<4x16xf32>
    %186 = arith.addf %183, %185 : vector<4x16xf32>
    %c0_149 = arith.constant 0 : index
    %c0_150 = arith.constant 0 : index
    %c128_151 = arith.constant 128 : index
    %187 = vector.load %arg9[%c0_149, %c0_150, %c128_151] : memref<1x4x256xf32, #tpu.memory_space<vmem>>, vector<1x4x16xf32>
    %188 = vector.shape_cast %187 : vector<1x4x16xf32> to vector<4x16xf32>
    %189 = vector.shape_cast %186 : vector<4x16xf32> to vector<1x4x16xf32>
    tpu.vector_store %arg9[%c0_149, %c0_150, %c128_151], %189 {strides = array<i32>} : memref<1x4x256xf32, #tpu.memory_space<vmem>>, vector<1x4x16xf32>,
    %c0_152 = arith.constant 0 : index
    %c181_153 = arith.constant 181 : index
    %190 = vector.load %arg12[%c0_152, %c181_153] : memref<4x324xf32, #tpu.memory_space<vmem>>, vector<4x16xf32>
    %c0_154 = arith.constant 0 : index
    %c0_155 = arith.constant 0 : index
    %c144_156 = arith.constant 144 : index
    %191 = vector.load %arg1[%c0_154, %c0_155, %c144_156] : memref<1x4x256xf32, #tpu.memory_space<vmem>>, vector<1x4x16xf32>
    %192 = vector.shape_cast %191 : vector<1x4x16xf32> to vector<4x16xf32>
    %193 = arith.addf %190, %192 : vector<4x16xf32>
    %c0_157 = arith.constant 0 : index
    %c0_158 = arith.constant 0 : index
    %c144_159 = arith.constant 144 : index
    %194 = vector.load %arg9[%c0_157, %c0_158, %c144_159] : memref<1x4x256xf32, #tpu.memory_space<vmem>>, vector<1x4x16xf32>
    %195 = vector.shape_cast %194 : vector<1x4x16xf32> to vector<4x16xf32>
    %196 = vector.shape_cast %193 : vector<4x16xf32> to vector<1x4x16xf32>
    tpu.vector_store %arg9[%c0_157, %c0_158, %c144_159], %196 {strides = array<i32>} : memref<1x4x256xf32, #tpu.memory_space<vmem>>, vector<1x4x16xf32>,
    %c0_160 = arith.constant 0 : index
    %c199_161 = arith.constant 199 : index
    %197 = vector.load %arg12[%c0_160, %c199_161] : memref<4x324xf32, #tpu.memory_space<vmem>>, vector<4x16xf32>
    %c0_162 = arith.constant 0 : index
    %c0_163 = arith.constant 0 : index
    %c160_164 = arith.constant 160 : index
    %198 = vector.load %arg1[%c0_162, %c0_163, %c160_164] : memref<1x4x256xf32, #tpu.memory_space<vmem>>, vector<1x4x16xf32>
    %199 = vector.shape_cast %198 : vector<1x4x16xf32> to vector<4x16xf32>
    %200 = arith.addf %197, %199 : vector<4x16xf32>
    %c0_165 = arith.constant 0 : index
    %c0_166 = arith.constant 0 : index
    %c160_167 = arith.constant 160 : index
    %201 = vector.load %arg9[%c0_165, %c0_166, %c160_167] : memref<1x4x256xf32, #tpu.memory_space<vmem>>, vector<1x4x16xf32>
    %202 = vector.shape_cast %201 : vector<1x4x16xf32> to vector<4x16xf32>
    %203 = vector.shape_cast %200 : vector<4x16xf32> to vector<1x4x16xf32>
    tpu.vector_store %arg9[%c0_165, %c0_166, %c160_167], %203 {strides = array<i32>} : memref<1x4x256xf32, #tpu.memory_space<vmem>>, vector<1x4x16xf32>,
    %c0_168 = arith.constant 0 : index
    %c217_169 = arith.constant 217 : index
    %204 = vector.load %arg12[%c0_168, %c217_169] : memref<4x324xf32, #tpu.memory_space<vmem>>, vector<4x16xf32>
    %c0_170 = arith.constant 0 : index
    %c0_171 = arith.constant 0 : index
    %c176_172 = arith.constant 176 : index
    %205 = vector.load %arg1[%c0_170, %c0_171, %c176_172] : memref<1x4x256xf32, #tpu.memory_space<vmem>>, vector<1x4x16xf32>
    %206 = vector.shape_cast %205 : vector<1x4x16xf32> to vector<4x16xf32>
    %207 = arith.addf %204, %206 : vector<4x16xf32>
    %c0_173 = arith.constant 0 : index
    %c0_174 = arith.constant 0 : index
    %c176_175 = arith.constant 176 : index
    %208 = vector.load %arg9[%c0_173, %c0_174, %c176_175] : memref<1x4x256xf32, #tpu.memory_space<vmem>>, vector<1x4x16xf32>
    %209 = vector.shape_cast %208 : vector<1x4x16xf32> to vector<4x16xf32>
    %210 = vector.shape_cast %207 : vector<4x16xf32> to vector<1x4x16xf32>
    tpu.vector_store %arg9[%c0_173, %c0_174, %c176_175], %210 {strides = array<i32>} : memref<1x4x256xf32, #tpu.memory_space<vmem>>, vector<1x4x16xf32>,
    %c0_176 = arith.constant 0 : index
    %c235_177 = arith.constant 235 : index
    %211 = vector.load %arg12[%c0_176, %c235_177] : memref<4x324xf32, #tpu.memory_space<vmem>>, vector<4x16xf32>
    %c0_178 = arith.constant 0 : index
    %c0_179 = arith.constant 0 : index
    %c192_180 = arith.constant 192 : index
    %212 = vector.load %arg1[%c0_178, %c0_179, %c192_180] : memref<1x4x256xf32, #tpu.memory_space<vmem>>, vector<1x4x16xf32>
    %213 = vector.shape_cast %212 : vector<1x4x16xf32> to vector<4x16xf32>
    %214 = arith.addf %211, %213 : vector<4x16xf32>
    %c0_181 = arith.constant 0 : index
    %c0_182 = arith.constant 0 : index
    %c192_183 = arith.constant 192 : index
    %215 = vector.load %arg9[%c0_181, %c0_182, %c192_183] : memref<1x4x256xf32, #tpu.memory_space<vmem>>, vector<1x4x16xf32>
    %216 = vector.shape_cast %215 : vector<1x4x16xf32> to vector<4x16xf32>
    %217 = vector.shape_cast %214 : vector<4x16xf32> to vector<1x4x16xf32>
    tpu.vector_store %arg9[%c0_181, %c0_182, %c192_183], %217 {strides = array<i32>} : memref<1x4x256xf32, #tpu.memory_space<vmem>>, vector<1x4x16xf32>,
    %c0_184 = arith.constant 0 : index
    %c253_185 = arith.constant 253 : index
    %218 = vector.load %arg12[%c0_184, %c253_185] : memref<4x324xf32, #tpu.memory_space<vmem>>, vector<4x16xf32>
    %c0_186 = arith.constant 0 : index
    %c0_187 = arith.constant 0 : index
    %c208_188 = arith.constant 208 : index
    %219 = vector.load %arg1[%c0_186, %c0_187, %c208_188] : memref<1x4x256xf32, #tpu.memory_space<vmem>>, vector<1x4x16xf32>
    %220 = vector.shape_cast %219 : vector<1x4x16xf32> to vector<4x16xf32>
    %221 = arith.addf %218, %220 : vector<4x16xf32>
    %c0_189 = arith.constant 0 : index
    %c0_190 = arith.constant 0 : index
    %c208_191 = arith.constant 208 : index
    %222 = vector.load %arg9[%c0_189, %c0_190, %c208_191] : memref<1x4x256xf32, #tpu.memory_space<vmem>>, vector<1x4x16xf32>
    %223 = vector.shape_cast %222 : vector<1x4x16xf32> to vector<4x16xf32>
    %224 = vector.shape_cast %221 : vector<4x16xf32> to vector<1x4x16xf32>
    tpu.vector_store %arg9[%c0_189, %c0_190, %c208_191], %224 {strides = array<i32>} : memref<1x4x256xf32, #tpu.memory_space<vmem>>, vector<1x4x16xf32>,
    %c0_192 = arith.constant 0 : index
    %c271_193 = arith.constant 271 : index
    %225 = vector.load %arg12[%c0_192, %c271_193] : memref<4x324xf32, #tpu.memory_space<vmem>>, vector<4x16xf32>
    %c0_194 = arith.constant 0 : index
    %c0_195 = arith.constant 0 : index
    %c224_196 = arith.constant 224 : index
    %226 = vector.load %arg1[%c0_194, %c0_195, %c224_196] : memref<1x4x256xf32, #tpu.memory_space<vmem>>, vector<1x4x16xf32>
    %227 = vector.shape_cast %226 : vector<1x4x16xf32> to vector<4x16xf32>
    %228 = arith.addf %225, %227 : vector<4x16xf32>
    %c0_197 = arith.constant 0 : index
    %c0_198 = arith.constant 0 : index
    %c224_199 = arith.constant 224 : index
    %229 = vector.load %arg9[%c0_197, %c0_198, %c224_199] : memref<1x4x256xf32, #tpu.memory_space<vmem>>, vector<1x4x16xf32>
    %230 = vector.shape_cast %229 : vector<1x4x16xf32> to vector<4x16xf32>
    %231 = vector.shape_cast %228 : vector<4x16xf32> to vector<1x4x16xf32>
    tpu.vector_store %arg9[%c0_197, %c0_198, %c224_199], %231 {strides = array<i32>} : memref<1x4x256xf32, #tpu.memory_space<vmem>>, vector<1x4x16xf32>,
    %c0_200 = arith.constant 0 : index
    %c289_201 = arith.constant 289 : index
    %232 = vector.load %arg12[%c0_200, %c289_201] : memref<4x324xf32, #tpu.memory_space<vmem>>, vector<4x16xf32>
    %c0_202 = arith.constant 0 : index
    %c0_203 = arith.constant 0 : index
    %c240_204 = arith.constant 240 : index
    %233 = vector.load %arg1[%c0_202, %c0_203, %c240_204] : memref<1x4x256xf32, #tpu.memory_space<vmem>>, vector<1x4x16xf32>
    %234 = vector.shape_cast %233 : vector<1x4x16xf32> to vector<4x16xf32>
    %235 = arith.addf %232, %234 : vector<4x16xf32>
    %c0_205 = arith.constant 0 : index
    %c0_206 = arith.constant 0 : index
    %c240_207 = arith.constant 240 : index
    %236 = vector.load %arg9[%c0_205, %c0_206, %c240_207] : memref<1x4x256xf32, #tpu.memory_space<vmem>>, vector<1x4x16xf32>
    %237 = vector.shape_cast %236 : vector<1x4x16xf32> to vector<4x16xf32>
    %238 = vector.shape_cast %235 : vector<4x16xf32> to vector<1x4x16xf32>
    tpu.vector_store %arg9[%c0_205, %c0_206, %c240_207], %238 {strides = array<i32>} : memref<1x4x256xf32, #tpu.memory_space<vmem>>, vector<1x4x16xf32>,
    return
  }
  func.func @transform_0(%arg0: i32) -> (i32, i32, i32) {
    %c0_i32 = arith.constant 0 : i32
    %c0_i32_0 = arith.constant 0 : i32
    %c0_i32_1 = arith.constant 0 : i32
    return %arg0, %c0_i32, %c0_i32_0 : i32, i32, i32
  }
  func.func @transform_1(%arg0: i32) -> (i32, i32) {
    %c0_i32 = arith.constant 0 : i32
    %c0_i32_0 = arith.constant 0 : i32
    %c0_i32_1 = arith.constant 0 : i32
    return %c0_i32, %c0_i32_0 : i32, i32
  }
  func.func @transform_2(%arg0: i32) -> (i32, i32) {
    %c0_i32 = arith.constant 0 : i32
    %c0_i32_0 = arith.constant 0 : i32
    %c0_i32_1 = arith.constant 0 : i32
    return %c0_i32, %c0_i32_0 : i32, i32
  }
  func.func @transform_3(%arg0: i32) -> (i32, i32, i32) {
    %c0_i32 = arith.constant 0 : i32
    %c0_i32_0 = arith.constant 0 : i32
    %c0_i32_1 = arith.constant 0 : i32
    %c0_i32_2 = arith.constant 0 : i32
    return %c0_i32, %c0_i32_0, %c0_i32_1 : i32, i32, i32
  }
  func.func @transform_4(%arg0: i32) -> (i32, i32) {
    %c0_i32 = arith.constant 0 : i32
    %c0_i32_0 = arith.constant 0 : i32
    %c0_i32_1 = arith.constant 0 : i32
    return %c0_i32, %c0_i32_0 : i32, i32
  }
  func.func @transform_5(%arg0: i32) -> (i32, i32) {
    %c0_i32 = arith.constant 0 : i32
    %c0_i32_0 = arith.constant 0 : i32
    %c0_i32_1 = arith.constant 0 : i32
    return %c0_i32, %c0_i32_0 : i32, i32
  }
  func.func @transform_6(%arg0: i32) -> (i32, i32) {
    %c0_i32 = arith.constant 0 : i32
    %c0_i32_0 = arith.constant 0 : i32
    %c0_i32_1 = arith.constant 0 : i32
    return %c0_i32, %c0_i32_0 : i32, i32
  }
  func.func @transform_7(%arg0: i32) -> (i32, i32) {
    %c0_i32 = arith.constant 0 : i32
    %c0_i32_0 = arith.constant 0 : i32
    %c0_i32_1 = arith.constant 0 : i32
    return %c0_i32, %c0_i32_0 : i32, i32
  }
  func.func @transform_8(%arg0: i32) -> (i32, i32, i32) {
    %c0_i32 = arith.constant 0 : i32
    %c0_i32_0 = arith.constant 0 : i32
    %c0_i32_1 = arith.constant 0 : i32
    return %arg0, %c0_i32, %c0_i32_0 : i32, i32, i32
  }
}

</mosaic_0001>

<llo_original>
// kernel: tpu_custom_call.1
$region0: #{tpu_custom_call.1}
  #allocation0 [shape = 'u32[]', space=smem, size = 0x4, offset = 0x4, fixed_abs, tag = 'smem constant byte address 0x4 - core index']
  #allocation1 [shape = 'u32[144,128]{1,0:T(1,128)}', space=vmem, size = 0x12000, scoped, tag = 'internal scratch']
  #allocation2 [shape = 'f32[16,324]{1,0:T(8,128)}', space=vmem, size = 0x6000, scoped, tag = 'scratch operand']
  #allocation3 [shape = 'f32[16,256]{1,0:T(8,128)}', space=vmem, size = 0x4000, scoped, tag = 'scratch operand']
  #allocation4 [shape = 'f32[4,324]{1,0:T(4,128)}', space=vmem, size = 0x1800, scoped, tag = 'scratch operand']
  %s0 = inlined_call_operand.vmem [shape: f32[2,4,256], index: 0, kind: input, shape index: {}]
  %s1 = inlined_call_operand.vmem [shape: bf16[16,4], index: 1, kind: input, shape index: {}]
  %s2 = inlined_call_operand.vmem [shape: f32[16,1], index: 2, kind: input, shape index: {}]
  %s3 = inlined_call_operand.vmem [shape: f32[9,16,1], index: 3, kind: input, shape index: {}]
  %s4 = inlined_call_operand.vmem [shape: f32[16,1], index: 4, kind: input, shape index: {}]
  %s5 = inlined_call_operand.vmem [shape: f32[16,1], index: 5, kind: input, shape index: {}]
  %s6 = inlined_call_operand.vmem [shape: bf16[4,16], index: 6, kind: input, shape index: {}]
  %s7 = inlined_call_operand.vmem [shape: f32[4,1], index: 7, kind: input, shape index: {}]
  %s8 = inlined_call_operand.hbm [shape: f32[2,4,256], index: 8, kind: output, shape index: {}]
  %s9 = sld [smem:[#allocation0]]
  $region65: #{tpu_custom_call.1} parent=0
    _
  %s11 = ssub.s32 1, %s9
  %s12 = scalar_select 0, %s11, %s9
  $region1: #{tpu_custom_call.1} parent=0
    #allocation5 [shape = 'u8[8192]{0}', space=vmem, size = 0x2000, scoped, tag = 'output window, operand 0']
    #allocation6 [shape = 's32[2]{0}', space=sflag, size = 0x8, scoped, tag = 'scoped memory for tpu_custom_call.1']
    %13 = vsyncpa [#allocation6], 0
    %s14 = scalar_lea.sflag [#allocation6], 1
    %15 = vsyncpa %s14, 0
    loop: start=0, step=1, limit=4
    $region2: #{tpu_custom_call.1} parent=1 // loop_pre_header
      _
    $region3: #{tpu_custom_call.1} parent=1 // loop_header
      %s17 = sphi 0, %s21
      %p18 = scmp.ge.s32.totalorder %s17, 4
      %s27 = sphi 0, %s29
      %s30 = sphi 0, %s27
      %s31 = sphi 0, %s30
      %s47 = sphi 0, %s31
      %s51 = sphi 0, %s51
      %s53 = sphi 0, %s51
      %s54 = sphi 0, %s53
      %s68 = sphi 0, %s54
      %s72 = sphi 0, %s72
      %s74 = sphi 0, %s72
      %s75 = sphi 0, %s74
      %s89 = sphi 0, %s75
      %s93 = sphi 0, %s93
      %s95 = sphi 0, %s93
      %s96 = sphi 0, %s95
      %s110 = sphi 0, %s96
      %s114 = sphi 0, %s114
      %s116 = sphi 0, %s114
      %s117 = sphi 0, %s116
      %s131 = sphi 0, %s117
      %s135 = sphi 0, %s135
      %s137 = sphi 0, %s135
      %s138 = sphi 0, %s137
      %s152 = sphi 0, %s138
      %s156 = sphi 0, %s156
      %s158 = sphi 0, %s156
      %s159 = sphi 0, %s158
      %s173 = sphi 0, %s159
      %s177 = sphi 0, %s177
      %s179 = sphi 0, %s177
      %s180 = sphi 0, %s179
      %s194 = sphi 0, %s180
      %s200 = sphi 0, %s202
      %s203 = sphi 0, %s200
      %s204 = sphi 0, %s203
      %s220 = sphi 0, %s204
    $region4: #{tpu_custom_call.1} parent=1 // loop_header_branch
      %20 = sbr.rel (%p18) target = $region8
    $region5: #{tpu_custom_call.1} parent=1 // loop_body
      %s22 = ssub.s32 %s17, 1
      %s23 = ssub.s32 %s17, 2
      %s24 = sadd.s32 %s17, 1
      %s25 = ssub.s32 %s17, %s24
      %p26 = scmp.eq.s32.totalorder %s25, 0
      %s28 = sadd.s32 %s27, 1
      %s29 = scalar_select %p26, %s27, %s28
      %p32 = pneg %p26
      %p33 = scmp.eq.s32.totalorder %s17, 1
      %p34 = por %p32, %p33
      %p35 = scmp.ne.s32.totalorder %s27, %s30
      %p36 = scmp.eq.s32.totalorder %s17, 0
      %p37 = por %p35, %p36
      %p38 = scmp.ne.s32.totalorder %s27, %s30
      %p39 = scmp.eq.s32.totalorder %s22, 1
      %p40 = por %p38, %p39
      %p41 = scmp.ne.s32.totalorder %s30, %s31
      %p42 = scmp.eq.s32.totalorder %s22, 0
      %p43 = por %p41, %p42
      %p44 = scmp.ne.s32.totalorder %s30, %s31
      %p45 = scmp.eq.s32.totalorder %s23, 1
      %p46 = por %p44, %p45
      %p48 = scmp.ne.s32.totalorder %s31, %s47
      %p49 = scmp.eq.s32.totalorder %s23, 0
      %p50 = por %p48, %p49
      %s52 = sadd.s32 %s51, 1
      %p55 = scmp.eq.s32.totalorder %s17, 1
      %p56 = scmp.ne.s32.totalorder %s51, %s53
      %p57 = scmp.eq.s32.totalorder %s17, 0
      %p58 = por %p56, %p57
      %p59 = scmp.ne.s32.totalorder %s51, %s53
      %p60 = scmp.eq.s32.totalorder %s22, 1
      %p61 = por %p59, %p60
      %p62 = scmp.ne.s32.totalorder %s53, %s54
      %p63 = scmp.eq.s32.totalorder %s22, 0
      %p64 = por %p62, %p63
      %p65 = scmp.ne.s32.totalorder %s53, %s54
      %p66 = scmp.eq.s32.totalorder %s23, 1
      %p67 = por %p65, %p66
      %p69 = scmp.ne.s32.totalorder %s54, %s68
      %p70 = scmp.eq.s32.totalorder %s23, 0
      %p71 = por %p69, %p70
      %s73 = sadd.s32 %s72, 1
      %p76 = scmp.eq.s32.totalorder %s17, 1
      %p77 = scmp.ne.s32.totalorder %s72, %s74
      %p78 = scmp.eq.s32.totalorder %s17, 0
      %p79 = por %p77, %p78
      %p80 = scmp.ne.s32.totalorder %s72, %s74
      %p81 = scmp.eq.s32.totalorder %s22, 1
      %p82 = por %p80, %p81
      %p83 = scmp.ne.s32.totalorder %s74, %s75
      %p84 = scmp.eq.s32.totalorder %s22, 0
      %p85 = por %p83, %p84
      %p86 = scmp.ne.s32.totalorder %s74, %s75
      %p87 = scmp.eq.s32.totalorder %s23, 1
      %p88 = por %p86, %p87
      %p90 = scmp.ne.s32.totalorder %s75, %s89
      %p91 = scmp.eq.s32.totalorder %s23, 0
      %p92 = por %p90, %p91
      %s94 = sadd.s32 %s93, 1
      %p97 = scmp.eq.s32.totalorder %s17, 1
      %p98 = scmp.ne.s32.totalorder %s93, %s95
      %p99 = scmp.eq.s32.totalorder %s17, 0
      %p100 = por %p98, %p99
      %p101 = scmp.ne.s32.totalorder %s93, %s95
      %p102 = scmp.eq.s32.totalorder %s22, 1
      %p103 = por %p101, %p102
      %p104 = scmp.ne.s32.totalorder %s95, %s96
      %p105 = scmp.eq.s32.totalorder %s22, 0
      %p106 = por %p104, %p105
      %p107 = scmp.ne.s32.totalorder %s95, %s96
      %p108 = scmp.eq.s32.totalorder %s23, 1
      %p109 = por %p107, %p108
      %p111 = scmp.ne.s32.totalorder %s96, %s110
      %p112 = scmp.eq.s32.totalorder %s23, 0
      %p113 = por %p111, %p112
      %s115 = sadd.s32 %s114, 1
      %p118 = scmp.eq.s32.totalorder %s17, 1
      %p119 = scmp.ne.s32.totalorder %s114, %s116
      %p120 = scmp.eq.s32.totalorder %s17, 0
      %p121 = por %p119, %p120
      %p122 = scmp.ne.s32.totalorder %s114, %s116
      %p123 = scmp.eq.s32.totalorder %s22, 1
      %p124 = por %p122, %p123
      %p125 = scmp.ne.s32.totalorder %s116, %s117
      %p126 = scmp.eq.s32.totalorder %s22, 0
      %p127 = por %p125, %p126
      %p128 = scmp.ne.s32.totalorder %s116, %s117
      %p129 = scmp.eq.s32.totalorder %s23, 1
      %p130 = por %p128, %p129
      %p132 = scmp.ne.s32.totalorder %s117, %s131
      %p133 = scmp.eq.s32.totalorder %s23, 0
      %p134 = por %p132, %p133
      %s136 = sadd.s32 %s135, 1
      %p139 = scmp.eq.s32.totalorder %s17, 1
      %p140 = scmp.ne.s32.totalorder %s135, %s137
      %p141 = scmp.eq.s32.totalorder %s17, 0
      %p142 = por %p140, %p141
      %p143 = scmp.ne.s32.totalorder %s135, %s137
      %p144 = scmp.eq.s32.totalorder %s22, 1
      %p145 = por %p143, %p144
      %p146 = scmp.ne.s32.totalorder %s137, %s138
      %p147 = scmp.eq.s32.totalorder %s22, 0
      %p148 = por %p146, %p147
      %p149 = scmp.ne.s32.totalorder %s137, %s138
      %p150 = scmp.eq.s32.totalorder %s23, 1
      %p151 = por %p149, %p150
      %p153 = scmp.ne.s32.totalorder %s138, %s152
      %p154 = scmp.eq.s32.totalorder %s23, 0
      %p155 = por %p153, %p154
      %s157 = sadd.s32 %s156, 1
      %p160 = scmp.eq.s32.totalorder %s17, 1
      %p161 = scmp.ne.s32.totalorder %s156, %s158
      %p162 = scmp.eq.s32.totalorder %s17, 0
      %p163 = por %p161, %p162
      %p164 = scmp.ne.s32.totalorder %s156, %s158
      %p165 = scmp.eq.s32.totalorder %s22, 1
      %p166 = por %p164, %p165
      %p167 = scmp.ne.s32.totalorder %s158, %s159
      %p168 = scmp.eq.s32.totalorder %s22, 0
      %p169 = por %p167, %p168
      %p170 = scmp.ne.s32.totalorder %s158, %s159
      %p171 = scmp.eq.s32.totalorder %s23, 1
      %p172 = por %p170, %p171
      %p174 = scmp.ne.s32.totalorder %s159, %s173
      %p175 = scmp.eq.s32.totalorder %s23, 0
      %p176 = por %p174, %p175
      %s178 = sadd.s32 %s177, 1
      %p181 = scmp.eq.s32.totalorder %s17, 1
      %p182 = scmp.ne.s32.totalorder %s177, %s179
      %p183 = scmp.eq.s32.totalorder %s17, 0
      %p184 = por %p182, %p183
      %p185 = scmp.ne.s32.totalorder %s177, %s179
      %p186 = scmp.eq.s32.totalorder %s22, 1
      %p187 = por %p185, %p186
      %p188 = scmp.ne.s32.totalorder %s179, %s180
      %p189 = scmp.eq.s32.totalorder %s22, 0
      %p190 = por %p188, %p189
      %p191 = scmp.ne.s32.totalorder %s179, %s180
      %p192 = scmp.eq.s32.totalorder %s23, 1
      %p193 = por %p191, %p192
      %p195 = scmp.ne.s32.totalorder %s180, %s194
      %p196 = scmp.eq.s32.totalorder %s23, 0
      %p197 = por %p195, %p196
      %s198 = ssub.s32 %s17, %s24
      %p199 = scmp.eq.s32.totalorder %s198, 0
      %s201 = sadd.s32 %s200, 1
      %s202 = scalar_select %p199, %s200, %s201
      %p205 = pneg %p199
      %p206 = scmp.eq.s32.totalorder %s17, 1
      %p207 = por %p205, %p206
      %p208 = scmp.ne.s32.totalorder %s200, %s203
      %p209 = scmp.eq.s32.totalorder %s17, 0
      %p210 = por %p208, %p209
      %p211 = scmp.ne.s32.totalorder %s200, %s203
      %p212 = scmp.eq.s32.totalorder %s22, 1
      %p213 = por %p211, %p212
      %p214 = scmp.ne.s32.totalorder %s203, %s204
      %p215 = scmp.eq.s32.totalorder %s22, 0
      %p216 = por %p214, %p215
      %p217 = scmp.ne.s32.totalorder %s203, %s204
      %p218 = scmp.eq.s32.totalorder %s23, 1
      %p219 = por %p217, %p218
      %p221 = scmp.ne.s32.totalorder %s204, %s220
      %p222 = scmp.eq.s32.totalorder %s23, 0
      %p223 = por %p221, %p222
      %p224 = scmp.le.s32.totalorder 1, %s17
      %p225 = scmp.lt.s32.totalorder %s17, 3
      %p226 = pnand %p224, %p225
      %p227 = pneg %p226
      // Predicated region
      $region9: #{tpu_custom_call.1} parent=5 // pred_check
        _
      $region10: #{tpu_custom_call.1} parent=5 // pred_check_branch
        %229 = sbr.rel (%p226) target = $region12
      $region11: #{tpu_custom_call.1} parent=5 // pred_region
        %s230 = ssub.s32 %s17, 1
        // Predicated region
        $region13: #{tpu_custom_call.1} parent=11 // pred_check
          %p231 = pneg %p64
        $region14: #{tpu_custom_call.1} parent=11 // pred_check_branch
          %233 = sbr.rel (%p231) target = $region16
        $region15: #{tpu_custom_call.1} parent=11 // pred_region
          _
        $region16: #{tpu_custom_call.1} parent=11 // pred_fallthru
          _
        // Predicated region
        $region17: #{tpu_custom_call.1} parent=11 // pred_check
          %p234 = pneg %p85
        $region18: #{tpu_custom_call.1} parent=11 // pred_check_branch
          %236 = sbr.rel (%p234) target = $region20
        $region19: #{tpu_custom_call.1} parent=11 // pred_region
          _
        $region20: #{tpu_custom_call.1} parent=11 // pred_fallthru
          _
        // Predicated region
        $region21: #{tpu_custom_call.1} parent=11 // pred_check
          %p237 = pneg %p106
        $region22: #{tpu_custom_call.1} parent=11 // pred_check_branch
          %239 = sbr.rel (%p237) target = $region24
        $region23: #{tpu_custom_call.1} parent=11 // pred_region
          _
        $region24: #{tpu_custom_call.1} parent=11 // pred_fallthru
          _
        // Predicated region
        $region25: #{tpu_custom_call.1} parent=11 // pred_check
          %p240 = pneg %p127
        $region26: #{tpu_custom_call.1} parent=11 // pred_check_branch
          %242 = sbr.rel (%p240) target = $region28
        $region27: #{tpu_custom_call.1} parent=11 // pred_region
          _
        $region28: #{tpu_custom_call.1} parent=11 // pred_fallthru
          _
        // Predicated region
        $region29: #{tpu_custom_call.1} parent=11 // pred_check
          %p243 = pneg %p148
        $region30: #{tpu_custom_call.1} parent=11 // pred_check_branch
          %245 = sbr.rel (%p243) target = $region32
        $region31: #{tpu_custom_call.1} parent=11 // pred_region
          _
        $region32: #{tpu_custom_call.1} parent=11 // pred_fallthru
          _
        // Predicated region
        $region33: #{tpu_custom_call.1} parent=11 // pred_check
          %p246 = pneg %p169
        $region34: #{tpu_custom_call.1} parent=11 // pred_check_branch
          %248 = sbr.rel (%p246) target = $region36
        $region35: #{tpu_custom_call.1} parent=11 // pred_region
          _
        $region36: #{tpu_custom_call.1} parent=11 // pred_fallthru
          _
        // Predicated region
        $region37: #{tpu_custom_call.1} parent=11 // pred_check
          %p249 = pneg %p190
        $region38: #{tpu_custom_call.1} parent=11 // pred_check_branch
          %251 = sbr.rel (%p249) target = $region40
        $region39: #{tpu_custom_call.1} parent=11 // pred_region
          _
        $region40: #{tpu_custom_call.1} parent=11 // pred_fallthru
          _
      $region12: #{tpu_custom_call.1} parent=5 // pred_fallthru
        _
      %p252 = scmp.lt.s32.totalorder %s17, 2
      // Predicated region
      $region41: #{tpu_custom_call.1} parent=5 // pred_check
        %p253 = pneg %p252
      $region42: #{tpu_custom_call.1} parent=5 // pred_check_branch
        %255 = sbr.rel (%p253) target = $region44
      $region43: #{tpu_custom_call.1} parent=5 // pred_region
        // Predicated region
        $region45: #{tpu_custom_call.1} parent=43 // pred_check
          %p256 = pneg %p37
        $region46: #{tpu_custom_call.1} parent=43 // pred_check_branch
          %258 = sbr.rel (%p256) target = $region48
        $region47: #{tpu_custom_call.1} parent=43 // pred_region
          %p259 = scmp.lt.s32.totalorder %s17, 1
          %s260 = scalar_select %p259, %s17, 1
          %s261 = smul.addr %s260, 2
          %s262 = smul.addr %s261, 4
          %s263 = scalar_lea.vmem %s0, %s262
        $region48: #{tpu_custom_call.1} parent=43 // pred_fallthru
          _
      $region44: #{tpu_custom_call.1} parent=5 // pred_fallthru
        _
      %p264 = scmp.le.s32.totalorder 1, %s17
      %p265 = scmp.lt.s32.totalorder %s17, 3
      %p266 = pnand %p264, %p265
      %p267 = pneg %p266
      // Predicated region
      $region49: #{tpu_custom_call.1} parent=5 // pred_check
        _
      $region50: #{tpu_custom_call.1} parent=5 // pred_check_branch
        %269 = sbr.rel (%p266) target = $region52
      $region51: #{tpu_custom_call.1} parent=5 // pred_region
        %s270 = ssub.s32 %s17, 1
        %p271 = scmp.lt.s32.totalorder %s22, 1
        %s272 = scalar_select %p271, %s22, 1
        %s273 = smul.addr %s272, 2
        %s274 = smul.addr %s273, 4
        %s275 = scalar_lea.vmem %s0, %s274
        %p276 = pneg %p43
        %p277 = pneg %p40
        %p278 = pneg %p64
        %p279 = pneg %p61
        %p280 = pneg %p85
        %p281 = pneg %p82
        %p282 = pneg %p106
        %p283 = pneg %p103
        %p284 = pneg %p127
        %p285 = pneg %p124
        %p286 = pneg %p148
        %p287 = pneg %p145
        %p288 = pneg %p169
        %p289 = pneg %p166
        %p290 = pneg %p190
        %p291 = pneg %p187
        %p292 = pneg %p216
        %p293 = pneg %p213
        %s294 = sand.u32 %s203, 1
        %s295 = scalar_lea.sflag [#allocation6], %s294
        %s296 = sand.u32 %s203, 1
        %s297 = smul.addr %s296, 8
        %s298 = scalar_lea.vmem [#allocation5], %s297
        %p299 = scmp.lt.s32.totalorder %s22, 1
        %s300 = scalar_select %p299, %s22, 1
        %s301 = smul.addr %s300, 2
        %s302 = smul.addr %s301, 4
        %s303 = scalar_lea.vmem %s0, %s302
        %305 = vst [vmem:[#allocation2] sm:$0xff] 0.0
        %306 = vst [vmem:[#allocation2 + $0x8] sm:$0xff] 0.0
        %vm307 = vcmask 556032
        %308 = vst.msk [vmem:[#allocation2 + $0x10] sm:$0xff] %vm307, 0.0
        %309 = vst [vmem:[#allocation2 + $0x18] sm:$0xff] 0.0
        %310 = vst [vmem:[#allocation2 + $0x20] sm:$0xff] 0.0
        %311 = vst.msk [vmem:[#allocation2 + $0x28] sm:$0xff] %vm307, 0.0
        %v312 = vld [vmem:[%s1] sm:$0xf]
        %v313 = vld [vmem:[%s1 + $0x4] sm:$0xf]
        %v314 = vld [vmem:[%s2] sm:$0xff]
        %v315 = vld [vmem:[%s2 + $0x8] sm:$0xff]
        %v316 = vld [vmem:[%s303] sm:$0xff]
        %v318 = vcombine.high %v316, %v316
        %v320 = vpack.c.bf16 %v316, %v316
        %v321 = vpack.c.bf16 %v318, %v318
        %323 = vset.pattern.permute.xlu0 0
        %324 = vperm.xlu0 %323, %v314
        %v325 = vpop.permute.xlu0 %324
        %328 = vset.pattern.permute.xlu0 0
        %329 = vperm.xlu0 %328, %v315
        %v330 = vpop.permute.xlu0 %329
        %v334 = vunpack.c.l.b16 %v312
        %v335 = vunpack.c.l.b16 %v313
        %v336 = vpack.c.b16 %v335, %v334
        %vm337 = vcmask 31744
        %v339 = vsel %vm337, %v336, 0
        %vm341 = vcmask 1041408
        %v343 = vsel %vm341, %v320, 0
        %v346 = vsel %vm341, %v321, 0
        %348 = vmatprep.subr.bf16.mxu0 0
        %349 = vmatpush1.bf16.msra.mxu0 0
        %350 = vmatprep.subr.bf16.mxu0 0
        %351 = vmatpush1.bf16.msra.mxu0 0
        %352 = vmatprep.subr.bf16.mxu0 0
        %353 = vmatpush1.bf16.msra.mxu0 0
        %354 = vmatprep.subr.bf16.mxu0 0
        %355 = vmatpush1.bf16.msra.mxu0 0
        %356 = vmatprep.subr.bf16.mxu0 0
        %357 = vmatpush1.bf16.msra.mxu0 0
        %358 = vmatprep.subr.bf16.mxu0 0
        %359 = vmatpush1.bf16.msra.mxu0 0
        %360 = vmatprep.subr.bf16.mxu0 0
        %361 = vmatpush1.bf16.msra.mxu0 0
        %362 = vmatprep.subr.bf16.mxu0 %v346
        %363 = vmatpush1.bf16.msra.mxu0 %v343
        %364 = vmatprep.subr.bf16.mxu0 0
        %365 = vmatpush2.bf16.msra.mxu0 0
        %366 = vmatprep.subr.bf16.mxu0 0
        %367 = vmatpush2.bf16.msra.mxu0 0
        %368 = vmatprep.subr.bf16.mxu0 0
        %369 = vmatpush2.bf16.msra.mxu0 0
        %370 = vmatprep.subr.bf16.mxu0 0
        %371 = vmatpush2.bf16.msra.mxu0 0
        %372 = vmatprep.subr.bf16.mxu0 0
        %373 = vmatpush2.bf16.msra.mxu0 0
        %374 = vmatprep.subr.bf16.mxu0 0
        %375 = vmatpush2.bf16.msra.mxu0 0
        %376 = vmatprep.subr.bf16.mxu0 0
        %377 = vmatpush2.bf16.msra.mxu0 0
        %378 = vmatprep.subr.bf16.mxu0 0
        %379 = vmatpush2.bf16.msra.mxu0 0
        %380 = vmatprep.mubr.bf16.mxu0 0
        %381 = vmatmul.mubr.bf16.gmra.mxu0 %v339
        %v382 = vpop.f32.mrf.mxu0
        %v383 = vadd.f32 %v325, %v382
        %v384 = vpop.f32.mrf.mxu0
        %v385 = vadd.f32 %v325, %v384
        %v386 = vpop.f32.mrf.mxu0
        %v387 = vadd.f32 %v330, %v386
        %v388 = vpop.f32.mrf.mxu0
        %v389 = vadd.f32 %v330, %v388
        %390 = vdwg.mxu0
        %391 = vst [vmem:[#allocation3] sm:$0xff] %v383
        %392 = vst [vmem:[#allocation3 + $0x8] sm:$0xff] %v385
        %393 = vst [vmem:[#allocation3 + $0x10] sm:$0xff] %v387
        %394 = vst [vmem:[#allocation3 + $0x18] sm:$0xff] %v389
        %v395 = vld [vmem:[#allocation3] sm:$0xff]
        %v396 = vld [vmem:[#allocation3 + $0x10] sm:$0xff]
        %399 = vrot.lane.b32.xlu0 %v395, 19
        %v400 = vpop.permute.xlu0 %399
        %401 = vrot.lane.b32.xlu0 %v396, 19
        %v402 = vpop.permute.xlu0 %401
        %vm405 = vcmask 285848
        %406 = vst.msk [vmem:[#allocation2] sm:$0xff] %vm405, %v400
        %407 = vst.msk [vmem:[#allocation2 + $0x18] sm:$0xff] %vm405, %v402
        %v408 = vld [vmem:[#allocation3] sm:$0xff]
        %v409 = vld [vmem:[#allocation3 + $0x10] sm:$0xff]
        %412 = vrot.lane.b32.xlu0 %v408, 21
        %v413 = vpop.permute.xlu0 %412
        %414 = vrot.lane.b32.xlu0 %v409, 21
        %v415 = vpop.permute.xlu0 %414
        %vm418 = vcmask 433448
        %419 = vst.msk [vmem:[#allocation2] sm:$0xff] %vm418, %v413
        %420 = vst.msk [vmem:[#allocation2 + $0x18] sm:$0xff] %vm418, %v415
        %v421 = vld [vmem:[#allocation3] sm:$0xff]
        %v422 = vld [vmem:[#allocation3 + $0x10] sm:$0xff]
        %425 = vrot.lane.b32.xlu0 %v421, 23
        %v426 = vpop.permute.xlu0 %425
        %427 = vrot.lane.b32.xlu0 %v422, 23
        %v428 = vpop.permute.xlu0 %427
        %vm431 = vcmask 581048
        %432 = vst.msk [vmem:[#allocation2] sm:$0xff] %vm431, %v426
        %433 = vst.msk [vmem:[#allocation2 + $0x18] sm:$0xff] %vm431, %v428
        %v434 = vld [vmem:[#allocation3] sm:$0xff]
        %v435 = vld [vmem:[#allocation3 + $0x10] sm:$0xff]
        %438 = vrot.lane.b32.xlu0 %v434, 25
        %v439 = vpop.permute.xlu0 %438
        %440 = vrot.lane.b32.xlu0 %v435, 25
        %v441 = vpop.permute.xlu0 %440
        %vm444 = vcmask 728648
        %445 = vst.msk [vmem:[#allocation2] sm:$0xff] %vm444, %v439
        %446 = vst.msk [vmem:[#allocation2 + $0x18] sm:$0xff] %vm444, %v441
        %v447 = vld [vmem:[#allocation3] sm:$0xff]
        %v448 = vld [vmem:[#allocation3 + $0x10] sm:$0xff]
        %451 = vrot.lane.b32.xlu0 %v447, 27
        %v452 = vpop.permute.xlu0 %451
        %453 = vrot.lane.b32.xlu0 %v448, 27
        %v454 = vpop.permute.xlu0 %453
        %vm457 = vcmask 876248
        %458 = vst.msk [vmem:[#allocation2] sm:$0xff] %vm457, %v452
        %459 = vst.msk [vmem:[#allocation2 + $0x18] sm:$0xff] %vm457, %v454
        %v460 = vld [vmem:[#allocation3] sm:$0xff]
        %v461 = vld [vmem:[#allocation3 + $0x10] sm:$0xff]
        %464 = vrot.lane.b32.xlu0 %v460, 29
        %v465 = vpop.permute.xlu0 %464
        %466 = vrot.lane.b32.xlu0 %v461, 29
        %v467 = vpop.permute.xlu0 %466
        %vm470 = vcmask 1023848
        %471 = vst.msk [vmem:[#allocation2] sm:$0xff] %vm470, %v465
        %472 = vst.msk [vmem:[#allocation2 + $0x18] sm:$0xff] %vm470, %v467
        %v473 = vld [vmem:[#allocation3] sm:$0xff]
        %v474 = vld [vmem:[#allocation3 + $0x10] sm:$0xff]
        %477 = vrot.lane.b32.xlu0 %v473, 31
        %v478 = vpop.permute.xlu0 %477
        %479 = vrot.lane.b32.xlu0 %v474, 31
        %v480 = vpop.permute.xlu0 %479
        %vm483 = vcmask 1048568
        %484 = vst.msk [vmem:[#allocation2] sm:$0xff] %vm483, %v478
        %vm485 = vcmask 121856
        %486 = vst.msk [vmem:[#allocation2 + $0x8] sm:$0xff] %vm485, %v478
        %487 = vst.msk [vmem:[#allocation2 + $0x18] sm:$0xff] %vm483, %v480
        %488 = vst.msk [vmem:[#allocation2 + $0x20] sm:$0xff] %vm485, %v480
        %v489 = vld [vmem:[#allocation3] sm:$0xff]
        %v490 = vld [vmem:[#allocation3 + $0x10] sm:$0xff]
        %493 = vrot.lane.b32.xlu0 %v489, 33
        %v494 = vpop.permute.xlu0 %493
        %495 = vrot.lane.b32.xlu0 %v490, 33
        %v496 = vpop.permute.xlu0 %495
        %vm499 = vcmask 269448
        %500 = vst.msk [vmem:[#allocation2 + $0x8] sm:$0xff] %vm499, %v494
        %501 = vst.msk [vmem:[#allocation2 + $0x20] sm:$0xff] %vm499, %v496
        %v502 = vld [vmem:[#allocation3 + $0x8] sm:$0xff]
        %v503 = vld [vmem:[#allocation3 + $0x18] sm:$0xff]
        %506 = vrot.lane.b32.xlu0 %v502, 35
        %v507 = vpop.permute.xlu0 %506
        %508 = vrot.lane.b32.xlu0 %v503, 35
        %v509 = vpop.permute.xlu0 %508
        %vm512 = vcmask 417048
        %513 = vst.msk [vmem:[#allocation2 + $0x8] sm:$0xff] %vm512, %v507
        %514 = vst.msk [vmem:[#allocation2 + $0x20] sm:$0xff] %vm512, %v509
        %v515 = vld [vmem:[#allocation3 + $0x8] sm:$0xff]
        %v516 = vld [vmem:[#allocation3 + $0x18] sm:$0xff]
        %519 = vrot.lane.b32.xlu0 %v515, 37
        %v520 = vpop.permute.xlu0 %519
        %521 = vrot.lane.b32.xlu0 %v516, 37
        %v522 = vpop.permute.xlu0 %521
        %vm525 = vcmask 564648
        %526 = vst.msk [vmem:[#allocation2 + $0x8] sm:$0xff] %vm525, %v520
        %527 = vst.msk [vmem:[#allocation2 + $0x20] sm:$0xff] %vm525, %v522
        %v528 = vld [vmem:[#allocation3 + $0x8] sm:$0xff]
        %v529 = vld [vmem:[#allocation3 + $0x18] sm:$0xff]
        %532 = vrot.lane.b32.xlu0 %v528, 39
        %v533 = vpop.permute.xlu0 %532
        %534 = vrot.lane.b32.xlu0 %v529, 39
        %v535 = vpop.permute.xlu0 %534
        %vm538 = vcmask 712248
        %539 = vst.msk [vmem:[#allocation2 + $0x8] sm:$0xff] %vm538, %v533
        %540 = vst.msk [vmem:[#allocation2 + $0x20] sm:$0xff] %vm538, %v535
        %v541 = vld [vmem:[#allocation3 + $0x8] sm:$0xff]
        %v542 = vld [vmem:[#allocation3 + $0x18] sm:$0xff]
        %545 = vrot.lane.b32.xlu0 %v541, 41
        %v546 = vpop.permute.xlu0 %545
        %547 = vrot.lane.b32.xlu0 %v542, 41
        %v548 = vpop.permute.xlu0 %547
        %vm551 = vcmask 859848
        %552 = vst.msk [vmem:[#allocation2 + $0x8] sm:$0xff] %vm551, %v546
        %553 = vst.msk [vmem:[#allocation2 + $0x20] sm:$0xff] %vm551, %v548
        %v554 = vld [vmem:[#allocation3 + $0x8] sm:$0xff]
        %v555 = vld [vmem:[#allocation3 + $0x18] sm:$0xff]
        %558 = vrot.lane.b32.xlu0 %v554, 43
        %v559 = vpop.permute.xlu0 %558
        %560 = vrot.lane.b32.xlu0 %v555, 43
        %v561 = vpop.permute.xlu0 %560
        %vm564 = vcmask 1007448
        %565 = vst.msk [vmem:[#allocation2 + $0x8] sm:$0xff] %vm564, %v559
        %566 = vst.msk [vmem:[#allocation2 + $0x20] sm:$0xff] %vm564, %v561
        %v567 = vld [vmem:[#allocation3 + $0x8] sm:$0xff]
        %v568 = vld [vmem:[#allocation3 + $0x18] sm:$0xff]
        %571 = vrot.lane.b32.xlu0 %v567, 45
        %v572 = vpop.permute.xlu0 %571
        %573 = vrot.lane.b32.xlu0 %v568, 45
        %v574 = vpop.permute.xlu0 %573
        %vm577 = vcmask 1048552
        %578 = vst.msk [vmem:[#allocation2 + $0x8] sm:$0xff] %vm577, %v572
        %vm579 = vcmask 105472
        %580 = vst.msk [vmem:[#allocation2 + $0x10] sm:$0xff] %vm579, %v572
        %581 = vst.msk [vmem:[#allocation2 + $0x20] sm:$0xff] %vm577, %v574
        %582 = vst.msk [vmem:[#allocation2 + $0x28] sm:$0xff] %vm579, %v574
        %v583 = vld [vmem:[#allocation3 + $0x8] sm:$0xff]
        %v584 = vld [vmem:[#allocation3 + $0x18] sm:$0xff]
        %587 = vrot.lane.b32.xlu0 %v583, 47
        %v588 = vpop.permute.xlu0 %587
        %589 = vrot.lane.b32.xlu0 %v584, 47
        %v590 = vpop.permute.xlu0 %589
        %vm593 = vcmask 253048
        %594 = vst.msk [vmem:[#allocation2 + $0x10] sm:$0xff] %vm593, %v588
        %595 = vst.msk [vmem:[#allocation2 + $0x28] sm:$0xff] %vm593, %v590
        %v596 = vld [vmem:[#allocation3 + $0x8] sm:$0xff]
        %v597 = vld [vmem:[#allocation3 + $0x18] sm:$0xff]
        %600 = vrot.lane.b32.xlu0 %v596, 49
        %v601 = vpop.permute.xlu0 %600
        %602 = vrot.lane.b32.xlu0 %v597, 49
        %v603 = vpop.permute.xlu0 %602
        %vm606 = vcmask 400648
        %607 = vst.msk [vmem:[#allocation2 + $0x10] sm:$0xff] %vm606, %v601
        %608 = vst.msk [vmem:[#allocation2 + $0x28] sm:$0xff] %vm606, %v603
        %v609 = vld [vmem:[#allocation2] sm:$0xff]
        %v610 = vld [vmem:[#allocation2 + $0x8] sm:$0xff]
        %v611 = vld [vmem:[#allocation2 + $0x10] sm:$0xff]
        %v612 = vld [vmem:[#allocation2 + $0x18] sm:$0xff]
        %v613 = vld [vmem:[#allocation2 + $0x20] sm:$0xff]
        %v614 = vld [vmem:[#allocation2 + $0x28] sm:$0xff]
        %vm615 = vcmask 1048096
        %616 = vrot.lane.b32.xlu0 %v609, 68
        %v617 = vpop.permute.xlu0 %616
        %v618 = vsel %vm615, %v617, %v611
        %619 = vrot.lane.b32.xlu0 %v612, 68
        %v620 = vpop.permute.xlu0 %619
        %v621 = vsel %vm615, %v620, %v614
        %622 = vrot.lane.b32.xlu0 %v610, 68
        %v623 = vpop.permute.xlu0 %622
        %624 = vrot.lane.b32.xlu0 %v613, 68
        %v625 = vpop.permute.xlu0 %624
        %626 = vrot.lane.b32.xlu0 %v618, 68
        %v627 = vpop.permute.xlu0 %626
        %628 = vrot.lane.b32.xlu0 %v621, 68
        %v629 = vpop.permute.xlu0 %628
        %v630 = vsel %vm615, %v623, %v617
        %v631 = vsel %vm615, %v625, %v620
        %v632 = vsel %vm615, %v627, %v623
        %v633 = vsel %vm615, %v629, %v625
        %v634 = vld [vmem:[%s3] sm:$0xff]
        %v635 = vld [vmem:[%s3 + $0x8] sm:$0xff]
        %637 = vset.pattern.permute.xlu0 0
        %638 = vperm.xlu0 %637, %v634
        %v639 = vpop.permute.xlu0 %638
        %642 = vset.pattern.permute.xlu0 0
        %643 = vperm.xlu0 %642, %v635
        %v644 = vpop.permute.xlu0 %643
        %v646 = vmul.f32 %v618, %v639
        %v647 = vmul.f32 %v630, %v639
        %v648 = vmul.f32 %v632, %v639
        %v649 = vmul.f32 %v621, %v644
        %v650 = vmul.f32 %v631, %v644
        %v651 = vmul.f32 %v633, %v644
        %s652 = scalar_lea.vmem %s3, 16
        %v653 = vld [vmem:[%s652] sm:$0xff]
        %v654 = vld [vmem:[%s652 + $0x8] sm:$0xff]
        %656 = vset.pattern.permute.xlu0 0
        %657 = vperm.xlu0 %656, %v653
        %v658 = vpop.permute.xlu0 %657
        %661 = vset.pattern.permute.xlu0 0
        %662 = vperm.xlu0 %661, %v654
        %v663 = vpop.permute.xlu0 %662
        %v665 = vmul.f32 %v618, %v658
        %v666 = vmul.f32 %v630, %v658
        %v667 = vmul.f32 %v632, %v658
        %v668 = vmul.f32 %v621, %v663
        %v669 = vmul.f32 %v631, %v663
        %v670 = vmul.f32 %v633, %v663
        %677 = vrot.lane.b32.xlu0 %v665, 127
        %v678 = vpop.permute.xlu0 %677
        %679 = vrot.lane.b32.xlu0 %v666, 127
        %v680 = vpop.permute.xlu0 %679
        %681 = vrot.lane.b32.xlu0 %v667, 127
        %v682 = vpop.permute.xlu0 %681
        %683 = vrot.lane.b32.xlu0 %v668, 127
        %v684 = vpop.permute.xlu0 %683
        %685 = vrot.lane.b32.xlu0 %v669, 127
        %v686 = vpop.permute.xlu0 %685
        %687 = vrot.lane.b32.xlu0 %v670, 127
        %v688 = vpop.permute.xlu0 %687
        %vm689 = vcmask 1039360
        %v690 = vsel %vm689, %v678, %v680
        %v691 = vsel %vm689, %v680, %v682
        %v692 = vsel %vm689, %v684, %v686
        %v693 = vsel %vm689, %v686, %v688
        %v700 = vadd.f32 %v646, %v690
        %v701 = vadd.f32 %v647, %v691
        %v702 = vadd.f32 %v648, %v682
        %v703 = vadd.f32 %v649, %v692
        %v704 = vadd.f32 %v650, %v693
        %v705 = vadd.f32 %v651, %v688
        %s706 = scalar_lea.vmem %s3, 32
        %v707 = vld [vmem:[%s706] sm:$0xff]
        %v708 = vld [vmem:[%s706 + $0x8] sm:$0xff]
        %710 = vset.pattern.permute.xlu0 0
        %711 = vperm.xlu0 %710, %v707
        %v712 = vpop.permute.xlu0 %711
        %715 = vset.pattern.permute.xlu0 0
        %716 = vperm.xlu0 %715, %v708
        %v717 = vpop.permute.xlu0 %716
        %v719 = vmul.f32 %v618, %v712
        %v720 = vmul.f32 %v630, %v712
        %v721 = vmul.f32 %v632, %v712
        %v722 = vmul.f32 %v621, %v717
        %v723 = vmul.f32 %v631, %v717
        %v724 = vmul.f32 %v633, %v717
        %731 = vrot.lane.b32.xlu0 %v719, 126
        %v732 = vpop.permute.xlu0 %731
        %733 = vrot.lane.b32.xlu0 %v720, 126
        %v734 = vpop.permute.xlu0 %733
        %735 = vrot.lane.b32.xlu0 %v721, 126
        %v736 = vpop.permute.xlu0 %735
        %737 = vrot.lane.b32.xlu0 %v722, 126
        %v738 = vpop.permute.xlu0 %737
        %739 = vrot.lane.b32.xlu0 %v723, 126
        %v740 = vpop.permute.xlu0 %739
        %741 = vrot.lane.b32.xlu0 %v724, 126
        %v742 = vpop.permute.xlu0 %741
        %vm743 = vcmask 1031168
        %v744 = vsel %vm743, %v732, %v734
        %v745 = vsel %vm743, %v734, %v736
        %v746 = vsel %vm743, %v738, %v740
        %v747 = vsel %vm743, %v740, %v742
        %v754 = vadd.f32 %v700, %v744
        %v755 = vadd.f32 %v701, %v745
        %v756 = vadd.f32 %v702, %v736
        %v757 = vadd.f32 %v703, %v746
        %v758 = vadd.f32 %v704, %v747
        %v759 = vadd.f32 %v705, %v742
        %s760 = scalar_lea.vmem %s3, 48
        %v761 = vld [vmem:[%s760] sm:$0xff]
        %v762 = vld [vmem:[%s760 + $0x8] sm:$0xff]
        %764 = vset.pattern.permute.xlu0 0
        %765 = vperm.xlu0 %764, %v761
        %v766 = vpop.permute.xlu0 %765
        %769 = vset.pattern.permute.xlu0 0
        %770 = vperm.xlu0 %769, %v762
        %v771 = vpop.permute.xlu0 %770
        %v773 = vmul.f32 %v618, %v766
        %v774 = vmul.f32 %v630, %v766
        %v775 = vmul.f32 %v632, %v766
        %v776 = vmul.f32 %v627, %v766
        %v777 = vmul.f32 %v621, %v771
        %v778 = vmul.f32 %v631, %v771
        %v779 = vmul.f32 %v633, %v771
        %v780 = vmul.f32 %v629, %v771
        %789 = vrot.lane.b32.xlu0 %v773, 110
        %v790 = vpop.permute.xlu0 %789
        %791 = vrot.lane.b32.xlu0 %v774, 110
        %v792 = vpop.permute.xlu0 %791
        %793 = vrot.lane.b32.xlu0 %v775, 110
        %v794 = vpop.permute.xlu0 %793
        %795 = vrot.lane.b32.xlu0 %v776, 110
        %v796 = vpop.permute.xlu0 %795
        %797 = vrot.lane.b32.xlu0 %v777, 110
        %v798 = vpop.permute.xlu0 %797
        %799 = vrot.lane.b32.xlu0 %v778, 110
        %v800 = vpop.permute.xlu0 %799
        %801 = vrot.lane.b32.xlu0 %v779, 110
        %v802 = vpop.permute.xlu0 %801
        %803 = vrot.lane.b32.xlu0 %v780, 110
        %v804 = vpop.permute.xlu0 %803
        %vm805 = vcmask 900096
        %v806 = vsel %vm805, %v790, %v792
        %v807 = vsel %vm805, %v792, %v794
        %v808 = vsel %vm805, %v794, %v796
        %v809 = vsel %vm805, %v798, %v800
        %v810 = vsel %vm805, %v800, %v802
        %v811 = vsel %vm805, %v802, %v804
        %v818 = vadd.f32 %v754, %v806
        %v819 = vadd.f32 %v755, %v807
        %v820 = vadd.f32 %v756, %v808
        %v821 = vadd.f32 %v757, %v809
        %v822 = vadd.f32 %v758, %v810
        %v823 = vadd.f32 %v759, %v811
        %s824 = scalar_lea.vmem %s3, 64
        %v825 = vld [vmem:[%s824] sm:$0xff]
        %v826 = vld [vmem:[%s824 + $0x8] sm:$0xff]
        %828 = vset.pattern.permute.xlu0 0
        %829 = vperm.xlu0 %828, %v825
        %v830 = vpop.permute.xlu0 %829
        %833 = vset.pattern.permute.xlu0 0
        %834 = vperm.xlu0 %833, %v826
        %v835 = vpop.permute.xlu0 %834
        %v837 = vmul.f32 %v609, %v830
        %v838 = vmul.f32 %v610, %v830
        %v839 = vmul.f32 %v611, %v830
        %v840 = vmul.f32 %v612, %v835
        %v841 = vmul.f32 %v613, %v835
        %v842 = vmul.f32 %v614, %v835
        %849 = vrot.lane.b32.xlu0 %v837, 49
        %v850 = vpop.permute.xlu0 %849
        %851 = vrot.lane.b32.xlu0 %v838, 49
        %v852 = vpop.permute.xlu0 %851
        %853 = vrot.lane.b32.xlu0 %v839, 49
        %v854 = vpop.permute.xlu0 %853
        %855 = vrot.lane.b32.xlu0 %v840, 49
        %v856 = vpop.permute.xlu0 %855
        %857 = vrot.lane.b32.xlu0 %v841, 49
        %v858 = vpop.permute.xlu0 %857
        %859 = vrot.lane.b32.xlu0 %v842, 49
        %v860 = vpop.permute.xlu0 %859
        %vm861 = vcmask 400384
        %v862 = vsel %vm861, %v850, %v852
        %v863 = vsel %vm861, %v852, %v854
        %v864 = vsel %vm861, %v856, %v858
        %v865 = vsel %vm861, %v858, %v860
        %v872 = vadd.f32 %v818, %v850
        %v873 = vadd.f32 %v819, %v862
        %v874 = vadd.f32 %v820, %v863
        %v875 = vadd.f32 %v821, %v856
        %v876 = vadd.f32 %v822, %v864
        %v877 = vadd.f32 %v823, %v865
        %s878 = scalar_lea.vmem %s3, 80
        %v879 = vld [vmem:[%s878] sm:$0xff]
        %v880 = vld [vmem:[%s878 + $0x8] sm:$0xff]
        %882 = vset.pattern.permute.xlu0 0
        %883 = vperm.xlu0 %882, %v879
        %v884 = vpop.permute.xlu0 %883
        %887 = vset.pattern.permute.xlu0 0
        %888 = vperm.xlu0 %887, %v880
        %v889 = vpop.permute.xlu0 %888
        %v891 = vmul.f32 %v609, %v884
        %v892 = vmul.f32 %v610, %v884
        %v893 = vmul.f32 %v618, %v884
        %v894 = vmul.f32 %v612, %v889
        %v895 = vmul.f32 %v613, %v889
        %v896 = vmul.f32 %v621, %v889
        %903 = vrot.lane.b32.xlu0 %v891, 48
        %v904 = vpop.permute.xlu0 %903
        %905 = vrot.lane.b32.xlu0 %v892, 48
        %v906 = vpop.permute.xlu0 %905
        %907 = vrot.lane.b32.xlu0 %v893, 48
        %v908 = vpop.permute.xlu0 %907
        %909 = vrot.lane.b32.xlu0 %v894, 48
        %v910 = vpop.permute.xlu0 %909
        %911 = vrot.lane.b32.xlu0 %v895, 48
        %v912 = vpop.permute.xlu0 %911
        %913 = vrot.lane.b32.xlu0 %v896, 48
        %v914 = vpop.permute.xlu0 %913
        %vm915 = vcmask 392192
        %v916 = vsel %vm915, %v904, %v906
        %v917 = vsel %vm915, %v906, %v908
        %v918 = vsel %vm915, %v910, %v912
        %v919 = vsel %vm915, %v912, %v914
        %v926 = vadd.f32 %v872, %v904
        %v927 = vadd.f32 %v873, %v916
        %v928 = vadd.f32 %v874, %v917
        %v929 = vadd.f32 %v875, %v910
        %v930 = vadd.f32 %v876, %v918
        %v931 = vadd.f32 %v877, %v919
        %s932 = scalar_lea.vmem %s3, 96
        %v933 = vld [vmem:[%s932] sm:$0xff]
        %v934 = vld [vmem:[%s932 + $0x8] sm:$0xff]
        %936 = vset.pattern.permute.xlu0 0
        %937 = vperm.xlu0 %936, %v933
        %v938 = vpop.permute.xlu0 %937
        %941 = vset.pattern.permute.xlu0 0
        %942 = vperm.xlu0 %941, %v934
        %v943 = vpop.permute.xlu0 %942
        %v945 = vmul.f32 %v609, %v938
        %v946 = vmul.f32 %v610, %v938
        %v947 = vmul.f32 %v618, %v938
        %v948 = vmul.f32 %v612, %v943
        %v949 = vmul.f32 %v613, %v943
        %v950 = vmul.f32 %v621, %v943
        %957 = vrot.lane.b32.xlu0 %v945, 32
        %v958 = vpop.permute.xlu0 %957
        %959 = vrot.lane.b32.xlu0 %v946, 32
        %v960 = vpop.permute.xlu0 %959
        %961 = vrot.lane.b32.xlu0 %v947, 32
        %v962 = vpop.permute.xlu0 %961
        %963 = vrot.lane.b32.xlu0 %v948, 32
        %v964 = vpop.permute.xlu0 %963
        %965 = vrot.lane.b32.xlu0 %v949, 32
        %v966 = vpop.permute.xlu0 %965
        %967 = vrot.lane.b32.xlu0 %v950, 32
        %v968 = vpop.permute.xlu0 %967
        %vm969 = vcmask 261120
        %v970 = vsel %vm969, %v958, %v960
        %v971 = vsel %vm969, %v960, %v962
        %v972 = vsel %vm969, %v964, %v966
        %v973 = vsel %vm969, %v966, %v968
        %v980 = vadd.f32 %v926, %v958
        %v981 = vadd.f32 %v927, %v970
        %v982 = vadd.f32 %v928, %v971
        %v983 = vadd.f32 %v929, %v964
        %v984 = vadd.f32 %v930, %v972
        %v985 = vadd.f32 %v931, %v973
        %s986 = scalar_lea.vmem %s3, 112
        %v987 = vld [vmem:[%s986] sm:$0xff]
        %v988 = vld [vmem:[%s986 + $0x8] sm:$0xff]
        %990 = vset.pattern.permute.xlu0 0
        %991 = vperm.xlu0 %990, %v987
        %v992 = vpop.permute.xlu0 %991
        %995 = vset.pattern.permute.xlu0 0
        %996 = vperm.xlu0 %995, %v988
        %v997 = vpop.permute.xlu0 %996
        %v999 = vmul.f32 %v609, %v992
        %v1000 = vmul.f32 %v610, %v992
        %v1001 = vmul.f32 %v618, %v992
        %v1002 = vmul.f32 %v612, %v997
        %v1003 = vmul.f32 %v613, %v997
        %v1004 = vmul.f32 %v621, %v997
        %1011 = vrot.lane.b32.xlu0 %v999, 31
        %v1012 = vpop.permute.xlu0 %1011
        %1013 = vrot.lane.b32.xlu0 %v1000, 31
        %v1014 = vpop.permute.xlu0 %1013
        %1015 = vrot.lane.b32.xlu0 %v1001, 31
        %v1016 = vpop.permute.xlu0 %1015
        %1017 = vrot.lane.b32.xlu0 %v1002, 31
        %v1018 = vpop.permute.xlu0 %1017
        %1019 = vrot.lane.b32.xlu0 %v1003, 31
        %v1020 = vpop.permute.xlu0 %1019
        %1021 = vrot.lane.b32.xlu0 %v1004, 31
        %v1022 = vpop.permute.xlu0 %1021
        %vm1023 = vcmask 252928
        %v1024 = vsel %vm1023, %v1012, %v1014
        %v1025 = vsel %vm1023, %v1014, %v1016
        %v1026 = vsel %vm1023, %v1018, %v1020
        %v1027 = vsel %vm1023, %v1020, %v1022
        %v1034 = vadd.f32 %v980, %v1012
        %v1035 = vadd.f32 %v981, %v1024
        %v1036 = vadd.f32 %v982, %v1025
        %v1037 = vadd.f32 %v983, %v1018
        %v1038 = vadd.f32 %v984, %v1026
        %v1039 = vadd.f32 %v985, %v1027
        %s1040 = scalar_lea.vmem %s3, 128
        %v1041 = vld [vmem:[%s1040] sm:$0xff]
        %v1042 = vld [vmem:[%s1040 + $0x8] sm:$0xff]
        %1044 = vset.pattern.permute.xlu0 0
        %1045 = vperm.xlu0 %1044, %v1041
        %v1046 = vpop.permute.xlu0 %1045
        %1049 = vset.pattern.permute.xlu0 0
        %1050 = vperm.xlu0 %1049, %v1042
        %v1051 = vpop.permute.xlu0 %1050
        %v1053 = vmul.f32 %v609, %v1046
        %v1054 = vmul.f32 %v610, %v1046
        %v1055 = vmul.f32 %v618, %v1046
        %v1056 = vmul.f32 %v612, %v1051
        %v1057 = vmul.f32 %v613, %v1051
        %v1058 = vmul.f32 %v621, %v1051
        %1065 = vrot.lane.b32.xlu0 %v1053, 30
        %v1066 = vpop.permute.xlu0 %1065
        %1067 = vrot.lane.b32.xlu0 %v1054, 30
        %v1068 = vpop.permute.xlu0 %1067
        %1069 = vrot.lane.b32.xlu0 %v1055, 30
        %v1070 = vpop.permute.xlu0 %1069
        %1071 = vrot.lane.b32.xlu0 %v1056, 30
        %v1072 = vpop.permute.xlu0 %1071
        %1073 = vrot.lane.b32.xlu0 %v1057, 30
        %v1074 = vpop.permute.xlu0 %1073
        %1075 = vrot.lane.b32.xlu0 %v1058, 30
        %v1076 = vpop.permute.xlu0 %1075
        %vm1077 = vcmask 244736
        %v1078 = vsel %vm1077, %v1066, %v1068
        %v1079 = vsel %vm1077, %v1068, %v1070
        %v1080 = vsel %vm1077, %v1072, %v1074
        %v1081 = vsel %vm1077, %v1074, %v1076
        %v1088 = vadd.f32 %v1034, %v1066
        %v1089 = vadd.f32 %v1035, %v1078
        %v1090 = vadd.f32 %v1036, %v1079
        %v1091 = vadd.f32 %v1037, %v1072
        %v1092 = vadd.f32 %v1038, %v1080
        %v1093 = vadd.f32 %v1039, %v1081
        %v1094 = vld [vmem:[%s4] sm:$0xff]
        %v1095 = vld [vmem:[%s4 + $0x8] sm:$0xff]
        %1097 = vset.pattern.permute.xlu0 0
        %1098 = vperm.xlu0 %1097, %v1094
        %v1099 = vpop.permute.xlu0 %1098
        %1102 = vset.pattern.permute.xlu0 0
        %1103 = vperm.xlu0 %1102, %v1095
        %v1104 = vpop.permute.xlu0 %1103
        %v1106 = vmul.f32 %v609, %v1099
        %v1107 = vmul.f32 %v610, %v1099
        %v1108 = vmul.f32 %v611, %v1099
        %v1109 = vmul.f32 %v612, %v1104
        %v1110 = vmul.f32 %v613, %v1104
        %v1111 = vmul.f32 %v614, %v1104
        %1118 = vrot.lane.b32.xlu0 %v1106, 49
        %v1119 = vpop.permute.xlu0 %1118
        %1120 = vrot.lane.b32.xlu0 %v1107, 49
        %v1121 = vpop.permute.xlu0 %1120
        %1122 = vrot.lane.b32.xlu0 %v1108, 49
        %v1123 = vpop.permute.xlu0 %1122
        %1124 = vrot.lane.b32.xlu0 %v1109, 49
        %v1125 = vpop.permute.xlu0 %1124
        %1126 = vrot.lane.b32.xlu0 %v1110, 49
        %v1127 = vpop.permute.xlu0 %1126
        %1128 = vrot.lane.b32.xlu0 %v1111, 49
        %v1129 = vpop.permute.xlu0 %1128
        %v1130 = vsel %vm861, %v1119, %v1121
        %v1131 = vsel %vm861, %v1121, %v1123
        %v1132 = vsel %vm861, %v1125, %v1127
        %v1133 = vsel %vm861, %v1127, %v1129
        %v1140 = vadd.f32 %v1088, %v1119
        %v1141 = vadd.f32 %v1089, %v1130
        %v1142 = vadd.f32 %v1090, %v1131
        %v1143 = vadd.f32 %v1091, %v1125
        %v1144 = vadd.f32 %v1092, %v1132
        %v1145 = vadd.f32 %v1093, %v1133
        %v1146 = vld [vmem:[%s5] sm:$0xff]
        %v1147 = vld [vmem:[%s5 + $0x8] sm:$0xff]
        %1149 = vset.pattern.permute.xlu0 0
        %1150 = vperm.xlu0 %1149, %v1146
        %v1151 = vpop.permute.xlu0 %1150
        %1154 = vset.pattern.permute.xlu0 0
        %1155 = vperm.xlu0 %1154, %v1147
        %v1156 = vpop.permute.xlu0 %1155
        %v1158 = vadd.f32 %v1140, %v1151
        %v1159 = vadd.f32 %v1141, %v1151
        %v1160 = vadd.f32 %v1142, %v1151
        %v1161 = vadd.f32 %v1143, %v1156
        %v1162 = vadd.f32 %v1144, %v1156
        %v1163 = vadd.f32 %v1145, %v1156
        %v1164 = vmul.f32 %v1161, 0.5
        %v1165 = vmul.f32 %v1162, 0.5
        %v1166 = vmul.f32 %v1163, 0.5
        %v1167 = vmul.f32 %v1158, 0.5
        %v1168 = vmul.f32 %v1159, 0.5
        %v1169 = vmul.f32 %v1160, 0.5
        %v1170 = vmul.f32 %v1161, %v1161
        %v1171 = vmul.f32 %v1162, %v1162
        %v1172 = vmul.f32 %v1163, %v1163
        %v1173 = vmul.f32 %v1158, %v1158
        %v1174 = vmul.f32 %v1159, %v1159
        %v1175 = vmul.f32 %v1160, %v1160
        %v1176 = vmul.f32 %v1170, %v1161
        %v1177 = vmul.f32 %v1171, %v1162
        %v1178 = vmul.f32 %v1172, %v1163
        %v1179 = vmul.f32 %v1173, %v1158
        %v1180 = vmul.f32 %v1174, %v1159
        %v1181 = vmul.f32 %v1175, %v1160
        %v1182 = vmul.f32 %v1176, 0.044715
        %v1183 = vmul.f32 %v1177, 0.044715
        %v1184 = vmul.f32 %v1178, 0.044715
        %v1185 = vmul.f32 %v1179, 0.044715
        %v1186 = vmul.f32 %v1180, 0.044715
        %v1187 = vmul.f32 %v1181, 0.044715
        %v1188 = vadd.f32 %v1161, %v1182
        %v1189 = vadd.f32 %v1162, %v1183
        %v1190 = vadd.f32 %v1163, %v1184
        %v1191 = vadd.f32 %v1158, %v1185
        %v1192 = vadd.f32 %v1159, %v1186
        %v1193 = vadd.f32 %v1160, %v1187
        %v1194 = vmul.f32 %v1188, 0.7978846
        %v1195 = vmul.f32 %v1189, 0.7978846
        %v1196 = vmul.f32 %v1190, 0.7978846
        %v1197 = vmul.f32 %v1191, 0.7978846
        %v1198 = vmul.f32 %v1192, 0.7978846
        %v1199 = vmul.f32 %v1193, 0.7978846
        %v1200 = vtanh.pop %v1194
        %v1201 = vtanh.pop %v1195
        %v1202 = vtanh.pop %v1196
        %v1203 = vtanh.pop %v1197
        %v1204 = vtanh.pop %v1198
        %v1205 = vtanh.pop %v1199
        %v1206 = vadd.f32 %v1200, 1.0
        %v1207 = vadd.f32 %v1201, 1.0
        %v1208 = vadd.f32 %v1202, 1.0
        %v1209 = vadd.f32 %v1203, 1.0
        %v1210 = vadd.f32 %v1204, 1.0
        %v1211 = vadd.f32 %v1205, 1.0
        %v1212 = vmul.f32 %v1164, %v1206
        %v1213 = vmul.f32 %v1165, %v1207
        %v1214 = vmul.f32 %v1166, %v1208
        %v1215 = vmul.f32 %v1167, %v1209
        %v1216 = vmul.f32 %v1168, %v1210
        %v1217 = vmul.f32 %v1169, %v1211
        %v1218 = vmul.f32 %v1212, %v1158
        %v1219 = vmul.f32 %v1213, %v1159
        %v1220 = vmul.f32 %v1214, %v1160
        %v1221 = vmul.f32 %v1215, %v1161
        %v1222 = vmul.f32 %v1216, %v1162
        %v1223 = vmul.f32 %v1217, %v1163
        %v1224 = vld [vmem:[%s6] sm:$0x3]
        %v1225 = vpack.c.bf16 %v1221, %v1218
        %v1226 = vpack.c.bf16 %v1222, %v1219
        %v1227 = vpack.c.bf16 %v1223, %v1220
        %v1228 = vld [vmem:[%s7] sm:$0xf]
        %1230 = vset.pattern.permute.xlu0 0
        %1231 = vperm.xlu0 %1230, %v1228
        %v1232 = vpop.permute.xlu0 %1231
        %1237 = vrot.lane.b32.xlu0 %v1225, 79
        %v1238 = vpop.permute.xlu0 %1237
        %1239 = vrot.lane.b32.xlu0 %v1226, 79
        %v1240 = vpop.permute.xlu0 %1239
        %1241 = vrot.lane.b32.xlu0 %v1227, 79
        %v1242 = vpop.permute.xlu0 %1241
        %vm1243 = vcmask 646144
        %v1244 = vsel %vm1243, %v1238, %v1240
        %v1245 = vsel %vm1243, %v1240, %v1242
        %vm1249 = vcmask 130048
        %v1251 = vsel %vm1249, %v1224, 0
        %1253 = vmatprep.subr.bf16.mxu0 0
        %1254 = vmatpush1.bf16.msra.mxu0 0
        %1255 = vmatprep.subr.bf16.mxu0 0
        %1256 = vmatpush1.bf16.msra.mxu0 0
        %1257 = vmatprep.subr.bf16.mxu0 0
        %1258 = vmatpush1.bf16.msra.mxu0 0
        %1259 = vmatprep.subr.bf16.mxu0 0
        %1260 = vmatpush1.bf16.msra.mxu0 0
        %1261 = vmatprep.subr.bf16.mxu0 0
        %1262 = vmatpush1.bf16.msra.mxu0 0
        %1263 = vmatprep.subr.bf16.mxu0 0
        %1264 = vmatpush1.bf16.msra.mxu0 0
        %1265 = vmatprep.subr.bf16.mxu0 0
        %1266 = vmatpush1.bf16.msra.mxu0 0
        %1267 = vmatprep.subr.bf16.mxu0 %v1245
        %1268 = vmatpush1.bf16.msra.mxu0 %v1244
        %1269 = vmatprep.subr.bf16.mxu0 0
        %1270 = vmatpush2.bf16.msra.mxu0 0
        %1271 = vmatprep.subr.bf16.mxu0 0
        %1272 = vmatpush2.bf16.msra.mxu0 0
        %1273 = vmatprep.subr.bf16.mxu0 0
        %1274 = vmatpush2.bf16.msra.mxu0 0
        %1275 = vmatprep.subr.bf16.mxu0 0
        %1276 = vmatpush2.bf16.msra.mxu0 0
        %1277 = vmatprep.subr.bf16.mxu0 0
        %1278 = vmatpush2.bf16.msra.mxu0 0
        %1279 = vmatprep.subr.bf16.mxu0 0
        %1280 = vmatpush2.bf16.msra.mxu0 0
        %1281 = vmatprep.subr.bf16.mxu0 0
        %1282 = vmatpush2.bf16.msra.mxu0 0
        %1283 = vmatprep.subr.bf16.mxu0 0
        %1284 = vmatpush2.bf16.msra.mxu0 0
        %1285 = vmatprep.mubr.bf16.mxu0 0
        %1286 = vmatmul.mubr.bf16.gmra.mxu0 %v1251
        %v1287 = vpop.f32.mrf.mxu0
        %v1288 = vadd.f32 %v1232, %v1287
        %v1289 = vpop.f32.mrf.mxu0
        %v1290 = vadd.f32 %v1232, %v1289
        %v1291 = vpop.f32.mrf.mxu0
        %v1292 = vpop.f32.mrf.mxu0
        %1293 = vdwg.mxu0
        %1294 = vmatprep.subr.bf16.mxu0 0
        %1295 = vmatpush1.bf16.msra.mxu0 0
        %1296 = vmatprep.subr.bf16.mxu0 0
        %1297 = vmatpush1.bf16.msra.mxu0 0
        %1298 = vmatprep.subr.bf16.mxu0 0
        %1299 = vmatpush1.bf16.msra.mxu0 0
        %1300 = vmatprep.subr.bf16.mxu0 0
        %1301 = vmatpush1.bf16.msra.mxu0 0
        %1302 = vmatprep.subr.bf16.mxu0 0
        %1303 = vmatpush1.bf16.msra.mxu0 0
        %1304 = vmatprep.subr.bf16.mxu0 0
        %1305 = vmatpush1.bf16.msra.mxu0 0
        %1306 = vmatprep.subr.bf16.mxu0 0
        %1307 = vmatpush1.bf16.msra.mxu0 0
        %1308 = vmatprep.subr.bf16.mxu0 0
        %1309 = vmatpush1.bf16.msra.mxu0 %v1242
        %1310 = vmatprep.subr.bf16.mxu0 0
        %1311 = vmatpush2.bf16.msra.mxu0 0
        %1312 = vmatprep.subr.bf16.mxu0 0
        %1313 = vmatpush2.bf16.msra.mxu0 0
        %1314 = vmatprep.subr.bf16.mxu0 0
        %1315 = vmatpush2.bf16.msra.mxu0 0
        %1316 = vmatprep.subr.bf16.mxu0 0
        %1317 = vmatpush2.bf16.msra.mxu0 0
        %1318 = vmatprep.subr.bf16.mxu0 0
        %1319 = vmatpush2.bf16.msra.mxu0 0
        %1320 = vmatprep.subr.bf16.mxu0 0
        %1321 = vmatpush2.bf16.msra.mxu0 0
        %1322 = vmatprep.subr.bf16.mxu0 0
        %1323 = vmatpush2.bf16.msra.mxu0 0
        %1324 = vmatprep.subr.bf16.mxu0 0
        %1325 = vmatpush2.bf16.msra.mxu0 0
        %1326 = vmatprep.mubr.bf16.mxu0 0
        %1327 = vmatmul.mubr.bf16.gmra.mxu0 %v1251
        %v1328 = vpop.f32.mrf.mxu0
        %v1329 = vadd.f32 %v1232, %v1328
        %v1330 = vpop.f32.mrf.mxu0
        %v1331 = vpop.f32.mrf.mxu0
        %v1332 = vpop.f32.mrf.mxu0
        %1333 = vdwg.mxu0
        %v1336 = vcombine.low %v1288, %v1290
        %1338 = vst [vmem:[#allocation4] sm:$0xff] %v1336
        %vm1339 = vcmask 551936
        %1340 = vst.msk [vmem:[#allocation4 + $0x8] sm:$0xf] %vm1339, %v1329
        %v1341 = vld [vmem:[#allocation4] sm:$0xf]
        %v1342 = vld [vmem:[%s303] sm:$0xf]
        %1344 = vrot.lane.b32.xlu0 %v1342, 19
        %v1345 = vpop.permute.xlu0 %1344
        %v1347 = vadd.f32 %v1341, %v1345
        %1349 = vrot.lane.b32.xlu0 %v1347, 109
        %v1350 = vpop.permute.xlu0 %1349
        %vm1352 = vcmask 125952
        %1353 = vst.msk [vmem:[%s298] sm:$0xf] %vm1352, %v1350
        %v1354 = vld [vmem:[#allocation4] sm:$0xf]
        %v1355 = vld [vmem:[%s303] sm:$0xf]
        %1357 = vrot.lane.b32.xlu0 %v1355, 21
        %v1358 = vpop.permute.xlu0 %1357
        %v1360 = vadd.f32 %v1354, %v1358
        %1362 = vrot.lane.b32.xlu0 %v1360, 107
        %v1363 = vpop.permute.xlu0 %1362
        %vm1365 = vcmask 257152
        %1366 = vst.msk [vmem:[%s298] sm:$0xf] %vm1365, %v1363
        %v1367 = vld [vmem:[#allocation4] sm:$0xf]
        %v1368 = vld [vmem:[%s303] sm:$0xf]
        %1370 = vrot.lane.b32.xlu0 %v1368, 23
        %v1371 = vpop.permute.xlu0 %1370
        %v1373 = vadd.f32 %v1367, %v1371
        %1375 = vrot.lane.b32.xlu0 %v1373, 105
        %v1376 = vpop.permute.xlu0 %1375
        %vm1378 = vcmask 388352
        %1379 = vst.msk [vmem:[%s298] sm:$0xf] %vm1378, %v1376
        %v1380 = vld [vmem:[#allocation4] sm:$0xf]
        %v1381 = vld [vmem:[%s303] sm:$0xf]
        %1383 = vrot.lane.b32.xlu0 %v1381, 25
        %v1384 = vpop.permute.xlu0 %1383
        %v1386 = vadd.f32 %v1380, %v1384
        %1388 = vrot.lane.b32.xlu0 %v1386, 103
        %v1389 = vpop.permute.xlu0 %1388
        %vm1391 = vcmask 519552
        %1392 = vst.msk [vmem:[%s298] sm:$0xf] %vm1391, %v1389
        %v1393 = vld [vmem:[#allocation4] sm:$0xf]
        %v1394 = vld [vmem:[%s303] sm:$0xf]
        %1396 = vrot.lane.b32.xlu0 %v1394, 27
        %v1397 = vpop.permute.xlu0 %1396
        %v1399 = vadd.f32 %v1393, %v1397
        %1401 = vrot.lane.b32.xlu0 %v1399, 101
        %v1402 = vpop.permute.xlu0 %1401
        %vm1404 = vcmask 650752
        %1405 = vst.msk [vmem:[%s298] sm:$0xf] %vm1404, %v1402
        %v1406 = vld [vmem:[#allocation4] sm:$0xf]
        %v1407 = vld [vmem:[%s303] sm:$0xf]
        %1409 = vrot.lane.b32.xlu0 %v1407, 29
        %v1410 = vpop.permute.xlu0 %1409
        %v1412 = vadd.f32 %v1406, %v1410
        %1414 = vrot.lane.b32.xlu0 %v1412, 99
        %v1415 = vpop.permute.xlu0 %1414
        %vm1417 = vcmask 781952
        %1418 = vst.msk [vmem:[%s298] sm:$0xf] %vm1417, %v1415
        %v1419 = vld [vmem:[#allocation4] sm:$0xff]
        %v1420 = vld [vmem:[%s303] sm:$0xf]
        %1422 = vrot.lane.b32.xlu0 %v1420, 31
        %v1423 = vpop.permute.xlu0 %1422
        %v1424 = vrot.slane %v1423, 4
        %v1425 = vsel %vm1023, %v1424, %v1423
        %v1427 = vadd.f32 %v1419, %v1425
        %1429 = vrot.lane.b32.xlu0 %v1427, 97
        %v1430 = vpop.permute.xlu0 %1429
        %v1431 = vrot.slane %v1430, 4
        %vm1432 = vcmask 793600
        %v1433 = vsel %vm1432, %v1430, %v1431
        %vm1435 = vcmask 913152
        %1436 = vst.msk [vmem:[%s298] sm:$0xf] %vm1435, %v1433
        %v1437 = vld [vmem:[#allocation4 + $0x4] sm:$0xf]
        %v1438 = vld [vmem:[%s303] sm:$0xf]
        %1440 = vrot.lane.b32.xlu0 %v1438, 33
        %v1441 = vpop.permute.xlu0 %1440
        %v1443 = vadd.f32 %v1437, %v1441
        %1445 = vrot.lane.b32.xlu0 %v1443, 95
        %v1446 = vpop.permute.xlu0 %1445
        %vm1448 = vcmask 1044352
        %1449 = vst.msk [vmem:[%s298] sm:$0xf] %vm1448, %v1446
        %v1450 = vld [vmem:[#allocation4 + $0x4] sm:$0xf]
        %v1451 = vld [vmem:[%s303 + $0x4] sm:$0xf]
        %1453 = vrot.lane.b32.xlu0 %v1451, 35
        %v1454 = vpop.permute.xlu0 %1453
        %v1456 = vadd.f32 %v1450, %v1454
        %1458 = vrot.lane.b32.xlu0 %v1456, 93
        %v1459 = vpop.permute.xlu0 %1458
        %1461 = vst.msk [vmem:[%s298 + $0x4] sm:$0xf] %vm1352, %v1459
        %v1462 = vld [vmem:[#allocation4 + $0x4] sm:$0xf]
        %v1463 = vld [vmem:[%s303 + $0x4] sm:$0xf]
        %1465 = vrot.lane.b32.xlu0 %v1463, 37
        %v1466 = vpop.permute.xlu0 %1465
        %v1468 = vadd.f32 %v1462, %v1466
        %1470 = vrot.lane.b32.xlu0 %v1468, 91
        %v1471 = vpop.permute.xlu0 %1470
        %1473 = vst.msk [vmem:[%s298 + $0x4] sm:$0xf] %vm1365, %v1471
        %v1474 = vld [vmem:[#allocation4 + $0x4] sm:$0xf]
        %v1475 = vld [vmem:[%s303 + $0x4] sm:$0xf]
        %1477 = vrot.lane.b32.xlu0 %v1475, 39
        %v1478 = vpop.permute.xlu0 %1477
        %v1480 = vadd.f32 %v1474, %v1478
        %1482 = vrot.lane.b32.xlu0 %v1480, 89
        %v1483 = vpop.permute.xlu0 %1482
        %1485 = vst.msk [vmem:[%s298 + $0x4] sm:$0xf] %vm1378, %v1483
        %v1486 = vld [vmem:[#allocation4 + $0x4] sm:$0xf]
        %v1487 = vld [vmem:[%s303 + $0x4] sm:$0xf]
        %1489 = vrot.lane.b32.xlu0 %v1487, 41
        %v1490 = vpop.permute.xlu0 %1489
        %v1492 = vadd.f32 %v1486, %v1490
        %1494 = vrot.lane.b32.xlu0 %v1492, 87
        %v1495 = vpop.permute.xlu0 %1494
        %1497 = vst.msk [vmem:[%s298 + $0x4] sm:$0xf] %vm1391, %v1495
        %v1498 = vld [vmem:[#allocation4 + $0x4] sm:$0xf]
        %v1499 = vld [vmem:[%s303 + $0x4] sm:$0xf]
        %1501 = vrot.lane.b32.xlu0 %v1499, 43
        %v1502 = vpop.permute.xlu0 %1501
        %v1504 = vadd.f32 %v1498, %v1502
        %1506 = vrot.lane.b32.xlu0 %v1504, 85
        %v1507 = vpop.permute.xlu0 %1506
        %1509 = vst.msk [vmem:[%s298 + $0x4] sm:$0xf] %vm1404, %v1507
        %v1510 = vld [vmem:[#allocation4 + $0x4] sm:$0xff]
        %v1511 = vld [vmem:[%s303 + $0x4] sm:$0xf]
        %1513 = vrot.lane.b32.xlu0 %v1511, 45
        %v1514 = vpop.permute.xlu0 %1513
        %v1515 = vrot.slane %v1514, 4
        %vm1516 = vcmask 367616
        %v1517 = vsel %vm1516, %v1515, %v1514
        %v1519 = vadd.f32 %v1510, %v1517
        %1521 = vrot.lane.b32.xlu0 %v1519, 83
        %v1522 = vpop.permute.xlu0 %1521
        %v1523 = vrot.slane %v1522, 4
        %vm1524 = vcmask 678912
        %v1525 = vsel %vm1524, %v1522, %v1523
        %1527 = vst.msk [vmem:[%s298 + $0x4] sm:$0xf] %vm1417, %v1525
        %v1528 = vld [vmem:[#allocation4 + $0x8] sm:$0xf]
        %v1529 = vld [vmem:[%s303 + $0x4] sm:$0xf]
        %1531 = vrot.lane.b32.xlu0 %v1529, 47
        %v1532 = vpop.permute.xlu0 %1531
        %v1534 = vadd.f32 %v1528, %v1532
        %1536 = vrot.lane.b32.xlu0 %v1534, 81
        %v1537 = vpop.permute.xlu0 %1536
        %1539 = vst.msk [vmem:[%s298 + $0x4] sm:$0xf] %vm1435, %v1537
        %v1540 = vld [vmem:[#allocation4 + $0x8] sm:$0xf]
        %v1541 = vld [vmem:[%s303 + $0x4] sm:$0xf]
        %1543 = vrot.lane.b32.xlu0 %v1541, 49
        %v1544 = vpop.permute.xlu0 %1543
        %v1546 = vadd.f32 %v1540, %v1544
        %1548 = vrot.lane.b32.xlu0 %v1546, 79
        %v1549 = vpop.permute.xlu0 %1548
        %1551 = vst.msk [vmem:[%s298 + $0x4] sm:$0xf] %vm1448, %v1549
        %s1552 = sand.u32 %s203, 1
        %s1553 = scalar_lea.sflag [#allocation6], %s1552
        %s1554 = sand.u32 %s203, 1
        %s1555 = smul.addr %s1554, 8
        %s1556 = scalar_lea.vmem [#allocation5], %s1555
        // Predicated region
        $region53: #{tpu_custom_call.1} parent=51 // pred_check
          %p1557 = pneg %p213
        $region54: #{tpu_custom_call.1} parent=51 // pred_check_branch
          %1559 = sbr.rel (%p1557) target = $region56
        $region55: #{tpu_custom_call.1} parent=51 // pred_region
          %s1561 = ssub.s32 128, 128
          %1562 = vsyncadd %s1553, %s1561
          %s1563 = smul.addr %s22, 2
          %s1564 = smul.addr %s1563, 64
          %s1565 = scalar_lea.hbm %s8, %s1564
          %s1567 = sshll.u32 %s1556, 4
          %s1568 = int_to_ptr.vmem [resolvable:$true] %s1567
          %1570 = dma.vmem_to_hbm [thread:$0]  %s1568, 128, %s1565, %s1553
        $region56: #{tpu_custom_call.1} parent=51 // pred_fallthru
          _
      $region52: #{tpu_custom_call.1} parent=5 // pred_fallthru
        _
      %p1571 = scmp.le.s32.totalorder 2, %s17
      // Predicated region
      $region57: #{tpu_custom_call.1} parent=5 // pred_check
        %p1572 = pneg %p1571
      $region58: #{tpu_custom_call.1} parent=5 // pred_check_branch
        %1574 = sbr.rel (%p1572) target = $region60
      $region59: #{tpu_custom_call.1} parent=5 // pred_region
        %s1575 = ssub.s32 %s17, 2
        // Predicated region
        $region61: #{tpu_custom_call.1} parent=59 // pred_check
          %p1576 = pneg %p219
        $region62: #{tpu_custom_call.1} parent=59 // pred_check_branch
          %1578 = sbr.rel (%p1576) target = $region64
        $region63: #{tpu_custom_call.1} parent=59 // pred_region
          %s1579 = sand.u32 %s204, 1
          %s1580 = scalar_lea.sflag [#allocation6], %s1579
          %s1581 = sand.u32 %s204, 1
          %s1582 = smul.addr %s1581, 8
          %s1583 = scalar_lea.vmem [#allocation5], %s1582
          %1584 = dma.done %s1580, 128
        $region64: #{tpu_custom_call.1} parent=59 // pred_fallthru
          _
      $region60: #{tpu_custom_call.1} parent=5 // pred_fallthru
        _
    $region6: #{tpu_custom_call.1} parent=1 // loop_footer
      %s21 = sadd.s32 1, %s17
    $region7: #{tpu_custom_call.1} parent=1 // loop_footer_branch
      %16 = sbr.rel target = $region3
    $region8: #{tpu_custom_call.1} parent=1 // loop_exit
      _
    %1585 = vsyncpa [#allocation6], 1
    %s1586 = scalar_lea.sflag [#allocation6], 1
    %1587 = vsyncpa %s1586, 1

</llo_original>
